<compile_context>
chip_gen: v5e
topology: v5e:2x2
jax: 0.10.0
libtpu: 0.0.40
codegen_flags: <defaults>
</compile_context>

<pallas_src>
import jax
import jax.numpy as jnp
from jax.experimental import pallas as pl
from jax.experimental.pallas import tpu as pltpu  # noqa: F401  (kept for convention)

LANE = 128


# ----------------------------- fused LSTM kernel -----------------------------

def _make_fused_lstm_kernel(S, BP, H, L):
    """Kernel body: L-layer LSTM stack (wavefront) + FC head, fully unrolled.

    Kernel args (refs), in order:
      x         : (S*BP, D)  time-major, sublane-padded input (rows t*BP+b)
      per layer : w_ih_t (D_in, 4H), w_hh_t (H, 4H), bias (1, 4H)   [L times]
      fc_w_pad  : (H, LANE)   real weights in cols [0, C)
      fc_b_pad  : (1, LANE)
      output    : packed (BP, 2*L*H + LANE)
                  cols [l*H,(l+1)*H)        -> h_n layer l
                  cols [(L+l)*H,(L+l+1)*H)  -> c_n layer l
                  cols [2*L*H, 2*L*H+LANE)  -> lane-padded logits
    """

    def kernel(*refs):
        x_ref = refs[0]
        layer_refs = refs[1:1 + 3 * L]
        fcw_ref = refs[1 + 3 * L]
        fcb_ref = refs[2 + 3 * L]
        out_ref = refs[3 + 3 * L]

        G = 4 * H

        # ---- hoisted per-lane activation constants (single-tanh trick) ----
        # sigmoid(x) = 0.5 * tanh(0.5 * x) + 0.5
        #   act = scale * tanh(scale * gates) + offset
        # scale = 0.5, offset = 0.5 on the i/f/o lanes; 1.0 / 0.0 on g lanes.
        lane = jax.lax.broadcasted_iota(jnp.int32, (BP, G), dimension=1)
        is_g = (lane >= 2 * H) & (lane < 3 * H)
        scale = jnp.where(is_g, 1.0, 0.5)        # (BP, 4H)  pre & post scale
        offset = jnp.where(is_g, 0.0, 0.5)       # (BP, 4H)  post offset

        def cell(gates, c_prev):
            act = scale * jnp.tanh(gates * scale) + offset
            i_g = act[:, 0 * H:1 * H]
            f_g = act[:, 1 * H:2 * H]
            g_g = act[:, 2 * H:3 * H]
            o_g = act[:, 3 * H:4 * H]
            c_new = f_g * c_prev + i_g * g_g
            h_new = o_g * jnp.tanh(c_new)
            return h_new, c_new

        # ---- weights (pre-transposed) and hoisted broadcasts ---------------
        wih = [layer_refs[3 * l][...] for l in range(L)]         # (D_in, 4H)
        whh = [layer_refs[3 * l + 1][...] for l in range(L)]     # (H, 4H)
        b_raw = [layer_refs[3 * l + 2][...] for l in range(L)]   # (1, 4H)
        # Per-step biases for layers >= 1: broadcast ONCE, reused every step.
        bias_b = [jnp.broadcast_to(b_raw[l], (BP, G)) for l in range(1, L)]

        # Layer-0 input projection for ALL timesteps at once (off the serial
        # recurrent path): (S*BP, D) @ (D, 4H) + b0.
        g0_all = jnp.dot(x_ref[...], wih[0],
                         preferred_element_type=jnp.float32) + b_raw[0]

        h = [jnp.zeros((BP, H), jnp.float32) for _ in range(L)]
        c = [jnp.zeros((BP, H), jnp.float32) for _ in range(L)]

        # ---- wavefront recurrence (fully unrolled) --------------------------
        # Layer l>0 uses a PER-STEP input projection from h[l-1] just produced
        # in this same iteration, so the critical path is ~S+L-1 stages.
        for t in range(S):
            # layer 0, step t: aligned full-sublane slice of the hoisted proj
            gates0 = g0_all[t * BP:(t + 1) * BP, :] + jnp.dot(
                h[0], whh[0], preferred_element_type=jnp.float32)
            h[0], c[0] = cell(gates0, c[0])
            # layers 1..L-1, step t (identity inter-layer handoff in vregs)
            # TODO(synk): inter-layer dropout (p=0.2) is train-mode only; the
            # inference (identity) path is implemented.
            for l in range(1, L):
                gates_l = (jnp.dot(h[l - 1], wih[l],
                                   preferred_element_type=jnp.float32)
                           + jnp.dot(h[l], whh[l],
                                     preferred_element_type=jnp.float32)
                           + bias_b[l - 1])
                h[l], c[l] = cell(gates_l, c[l])

        # ---- fused FC head + single lane-dense packed store -----------------
        logits_pad = jnp.dot(h[L - 1], fcw_ref[...],
                             preferred_element_type=jnp.float32) + fcb_ref[...]
        out_ref[...] = jnp.concatenate(h + c + [logits_pad], axis=1)

    return kernel


# ------------------------------- Model wrapper --------------------------------

def init_params(key, input_dim, hidden_dim, num_layers, num_classes):
    """Mimics nn.LSTM / nn.Linear U(-1/sqrt(H), 1/sqrt(H)) init.

    Weights are stored pre-transposed and biases pre-summed so the forward
    pass never emits per-call transpose ops.
    """
    k = 1.0 / jnp.sqrt(jnp.float32(hidden_dim))
    params = {"lstm": []}
    for layer in range(num_layers):
        d_in = input_dim if layer == 0 else hidden_dim
        key, k1, k2, k3, k4 = jax.random.split(key, 5)
        w_ih = jax.random.uniform(k1, (4 * hidden_dim, d_in), jnp.float32, -k, k)
        w_hh = jax.random.uniform(k2, (4 * hidden_dim, hidden_dim), jnp.float32, -k, k)
        b_ih = jax.random.uniform(k3, (4 * hidden_dim,), jnp.float32, -k, k)
        b_hh = jax.random.uniform(k4, (4 * hidden_dim,), jnp.float32, -k, k)
        params["lstm"].append({
            "w_ih_t": jnp.transpose(w_ih),          # (D_in, 4H)
            "w_hh_t": jnp.transpose(w_hh),          # (H, 4H)
            "b": (b_ih + b_hh).reshape(1, -1),      # (1, 4H)
        })
    key, k1, k2 = jax.random.split(key, 3)
    fc_w = jax.random.uniform(k1, (num_classes, hidden_dim), jnp.float32, -k, k)
    fc_b = jax.random.uniform(k2, (num_classes,), jnp.float32, -k, k)
    params["fc_w_t"] = jnp.transpose(fc_w)          # (H, C)
    params["fc_b"] = fc_b.reshape(1, -1)            # (1, C)
    return params


def lstm_model_forward(params, x):
    """x: (B, S, input_dim) batch_first, like the PyTorch module.

    Returns (output, (h_n, c_n)) with shapes (B, C), (L, B, H), (L, B, H).
    """
    # TODO(synk): optional nonzero initial hidden_state is not plumbed; the
    # default-None (zero-init) path of the PyTorch module is implemented.
    B, S, D = x.shape
    L = len(params["lstm"])
    H = params["lstm"][0]["w_hh_t"].shape[0]
    C = params["fc_w_t"].shape[1]
    BP = max(8, ((B + 7) // 8) * 8)                  # sublane-padded batch

    # Time-major, sublane-padded: row t*BP + b == x[b, t] for b < B.
    x_tm = jnp.transpose(x, (1, 0, 2))                                   # (S,B,D)
    x_pad = jnp.zeros((S, BP, D), jnp.float32).at[:, :B, :].set(x_tm)
    x_pad = x_pad.reshape(S * BP, D)

    # Lane-pad the FC head to width 128 so the fused head's store is lane-dense.
    fcw_pad = jnp.zeros((H, LANE), jnp.float32).at[:, :C].set(params["fc_w_t"])
    fcb_pad = jnp.zeros((1, LANE), jnp.float32).at[:, :C].set(params["fc_b"])

    args = [x_pad]
    for lp in params["lstm"]:
        args += [lp["w_ih_t"], lp["w_hh_t"], lp["b"]]
    args += [fcw_pad, fcb_pad]

    W_out = 2 * L * H + LANE
    flops = (2 * S * BP * 4 * H * D                       # hoisted L0 input proj
             + 2 * S * BP * 4 * H * H * (2 * L - 1)       # recurrent matmuls
             + 2 * BP * H * LANE)                         # FC head
    transcendentals = L * S * BP * 5 * H                  # gate tanh + cell tanh
    bytes_accessed = 4 * (sum(int(a.size) for a in args) + BP * W_out)

    kernel = _make_fused_lstm_kernel(S, BP, H, L)
    packed = pl.pallas_call(
        kernel,
        out_shape=jax.ShapeDtypeStruct((BP, W_out), jnp.float32),
        cost_estimate=pl.CostEstimate(flops=flops,
                                      transcendentals=transcendentals,
                                      bytes_accessed=bytes_accessed),
    )(*args)

    h_n = jnp.stack([packed[:B, l * H:(l + 1) * H] for l in range(L)])
    c_n = jnp.stack([packed[:B, (L + l) * H:(L + l + 1) * H] for l in range(L)])
    out = packed[:B, 2 * L * H:2 * L * H + C]
    return out, (h_n, c_n)


# ------------------------------ pure-JAX reference -----------------------------

def ref_forward(params, x):
    B = x.shape[0]
    layer_in = x
    h_all, c_all = [], []
    for lp in params["lstm"]:
        H = lp["w_hh_t"].shape[0]

        def step(carry, x_t, lp=lp):
            h, c = carry
            gates = x_t @ lp["w_ih_t"] + h @ lp["w_hh_t"] + lp["b"]
            i, f, g, o = jnp.split(gates, 4, axis=-1)
            i = jax.nn.sigmoid(i); f = jax.nn.sigmoid(f)
            g = jnp.tanh(g); o = jax.nn.sigmoid(o)
            c = f * c + i * g
            h = o * jnp.tanh(c)
            return (h, c), h

        h0 = jnp.zeros((B, H), jnp.float32)
        c0 = jnp.zeros((B, H), jnp.float32)
        (hn, cn), ys = jax.lax.scan(step, (h0, c0), jnp.transpose(layer_in, (1, 0, 2)))
        layer_in = jnp.transpose(ys, (1, 0, 2))
        h_all.append(hn); c_all.append(cn)
    last = layer_in[:, -1, :]
    out = last @ params["fc_w_t"] + params["fc_b"]
    return out, (jnp.stack(h_all), jnp.stack(c_all))


# ------------------------------------ main ------------------------------------

if __name__ == "__main__":
    B, S = 2, 8
    INPUT_DIM, HIDDEN_DIM, NUM_LAYERS, NUM_CLASSES = 5, 32, 2, 1

    key = jax.random.PRNGKey(0)
    key, pkey, xkey = jax.random.split(key, 3)
    params = init_params(pkey, INPUT_DIM, HIDDEN_DIM, NUM_LAYERS, NUM_CLASSES)
    x = jax.random.normal(xkey, (B, S, INPUT_DIM), jnp.float32)

    out, (h_n, c_n) = lstm_model_forward(params, x)
    out = jax.block_until_ready(out)
    h_n = jax.block_until_ready(h_n)
    c_n = jax.block_until_ready(c_n)

    ref_out, (ref_h, ref_c) = ref_forward(params, x)
    assert out.shape == (B, NUM_CLASSES)
    assert h_n.shape == (NUM_LAYERS, B, HIDDEN_DIM)
    assert c_n.shape == (NUM_LAYERS, B, HIDDEN_DIM)
    assert jnp.allclose(out, ref_out, atol=1e-3, rtol=1e-3)
    assert jnp.allclose(h_n, ref_h, atol=1e-3, rtol=1e-3)
    assert jnp.allclose(c_n, ref_c, atol=1e-3, rtol=1e-3)

    print("KERNEL_OK")
</pallas_src>

<mosaic_0001>
module attributes {stable_mosaic.version = 11 : i64} {
  func.func @kernel(%arg0: memref<64x5xf32, #tpu.memory_space<vmem>>, %arg1: memref<5x128xf32, #tpu.memory_space<vmem>>, %arg2: memref<32x128xf32, #tpu.memory_space<vmem>>, %arg3: memref<1x128xf32, #tpu.memory_space<vmem>>, %arg4: memref<32x128xf32, #tpu.memory_space<vmem>>, %arg5: memref<32x128xf32, #tpu.memory_space<vmem>>, %arg6: memref<1x128xf32, #tpu.memory_space<vmem>>, %arg7: memref<32x128xf32, #tpu.memory_space<vmem>>, %arg8: memref<1x128xf32, #tpu.memory_space<vmem>>, %arg9: memref<8x256xf32, #tpu.memory_space<vmem>>) attributes {dimension_semantics = [], scalar_prefetch = 0 : i64, scratch_operands = 0 : i64, tpu.core_type = #tpu.core_type<tc>} {
    %0 = tpu.iota {dimensions = array<i32: 1>} : vector<8x128xi32>
    %c64_i32 = arith.constant 64 : i32
    %1 = vector.broadcast %c64_i32 : i32 to vector<8x128xi32>
    %2 = arith.cmpi sge, %0, %1 : vector<8x128xi32>
    %c96_i32 = arith.constant 96 : i32
    %3 = vector.broadcast %c96_i32 : i32 to vector<8x128xi32>
    %4 = arith.cmpi slt, %0, %3 : vector<8x128xi32>
    %5 = arith.andi %2, %4 : vector<8x128xi1>
    %cst = arith.constant 1.000000e+00 : f32
    %cst_0 = arith.constant 5.000000e-01 : f32
    %6 = vector.broadcast %cst : f32 to vector<8x128xf32>
    %7 = vector.broadcast %cst_0 : f32 to vector<8x128xf32>
    %8 = arith.select %5, %6, %7 : vector<8x128xi1>, vector<8x128xf32>
    %cst_1 = arith.constant 0.000000e+00 : f32
    %cst_2 = arith.constant 5.000000e-01 : f32
    %9 = vector.broadcast %cst_1 : f32 to vector<8x128xf32>
    %10 = vector.broadcast %cst_2 : f32 to vector<8x128xf32>
    %11 = arith.select %5, %9, %10 : vector<8x128xi1>, vector<8x128xf32>
    %c0 = arith.constant 0 : index
    %c0_3 = arith.constant 0 : index
    %12 = vector.load %arg1[%c0, %c0_3] : memref<5x128xf32, #tpu.memory_space<vmem>>, vector<5x128xf32>
    %c0_4 = arith.constant 0 : index
    %c0_5 = arith.constant 0 : index
    %13 = vector.load %arg4[%c0_4, %c0_5] : memref<32x128xf32, #tpu.memory_space<vmem>>, vector<32x128xf32>
    %c0_6 = arith.constant 0 : index
    %c0_7 = arith.constant 0 : index
    %14 = vector.load %arg2[%c0_6, %c0_7] : memref<32x128xf32, #tpu.memory_space<vmem>>, vector<32x128xf32>
    %c0_8 = arith.constant 0 : index
    %c0_9 = arith.constant 0 : index
    %15 = vector.load %arg5[%c0_8, %c0_9] : memref<32x128xf32, #tpu.memory_space<vmem>>, vector<32x128xf32>
    %c0_10 = arith.constant 0 : index
    %c0_11 = arith.constant 0 : index
    %16 = vector.load %arg3[%c0_10, %c0_11] : memref<1x128xf32, #tpu.memory_space<vmem>>, vector<1x128xf32>
    %c0_12 = arith.constant 0 : index
    %c0_13 = arith.constant 0 : index
    %17 = vector.load %arg6[%c0_12, %c0_13] : memref<1x128xf32, #tpu.memory_space<vmem>>, vector<1x128xf32>
    %18 = vector.shape_cast %17 : vector<1x128xf32> to vector<1x128xf32>
    %19 = vector.broadcast %18 : vector<1x128xf32> to vector<8x128xf32>
    %c0_14 = arith.constant 0 : index
    %c0_15 = arith.constant 0 : index
    %20 = vector.load %arg0[%c0_14, %c0_15] : memref<64x5xf32, #tpu.memory_space<vmem>>, vector<64x5xf32>
    %cst_16 = arith.constant dense<0.000000e+00> : vector<64x128xf32>
    %21 = tpu.matmul %20, %12, %cst_16 {dimension_numbers = #tpu.dot_dimension_numbers<[1], [0], [0], [1], [0, 0, 1, 1], [], []>} : vector<64x5xf32>, vector<5x128xf32>, vector<64x128xf32> -> vector<64x128xf32>
    %22 = vector.broadcast %16 : vector<1x128xf32> to vector<64x128xf32>
    %23 = arith.addf %21, %22 : vector<64x128xf32>
    %cst_17 = arith.constant 0.000000e+00 : f32
    %24 = vector.broadcast %cst_17 : f32 to vector<8x32xf32>
    %cst_18 = arith.constant 0.000000e+00 : f32
    %25 = vector.broadcast %cst_18 : f32 to vector<8x32xf32>
    %cst_19 = arith.constant 0.000000e+00 : f32
    %26 = vector.broadcast %cst_19 : f32 to vector<8x32xf32>
    %cst_20 = arith.constant 0.000000e+00 : f32
    %27 = vector.broadcast %cst_20 : f32 to vector<8x32xf32>
    %28 = vector.extract_strided_slice %23 {offsets = [0, 0], sizes = [8, 128], strides = [1, 1]} : vector<64x128xf32> to vector<8x128xf32>
    %cst_21 = arith.constant dense<0.000000e+00> : vector<8x128xf32>
    %29 = tpu.matmul %24, %14, %cst_21 {dimension_numbers = #tpu.dot_dimension_numbers<[1], [0], [0], [1], [0, 0, 1, 1], [], []>} : vector<8x32xf32>, vector<32x128xf32>, vector<8x128xf32> -> vector<8x128xf32>
    %30 = arith.addf %28, %29 : vector<8x128xf32>
    %31 = arith.mulf %30, %8 : vector<8x128xf32>
    %32 = math.tanh %31 : vector<8x128xf32>
    %33 = arith.mulf %8, %32 : vector<8x128xf32>
    %34 = arith.addf %33, %11 : vector<8x128xf32>
    %35 = vector.extract_strided_slice %34 {offsets = [0, 0], sizes = [8, 32], strides = [1, 1]} : vector<8x128xf32> to vector<8x32xf32>
    %36 = vector.extract_strided_slice %34 {offsets = [0, 32], sizes = [8, 32], strides = [1, 1]} : vector<8x128xf32> to vector<8x32xf32>
    %37 = vector.extract_strided_slice %34 {offsets = [0, 64], sizes = [8, 32], strides = [1, 1]} : vector<8x128xf32> to vector<8x32xf32>
    %38 = vector.extract_strided_slice %34 {offsets = [0, 96], sizes = [8, 32], strides = [1, 1]} : vector<8x128xf32> to vector<8x32xf32>
    %39 = arith.mulf %36, %26 : vector<8x32xf32>
    %40 = arith.mulf %35, %37 : vector<8x32xf32>
    %41 = arith.addf %39, %40 : vector<8x32xf32>
    %42 = math.tanh %41 : vector<8x32xf32>
    %43 = arith.mulf %38, %42 : vector<8x32xf32>
    %cst_22 = arith.constant dense<0.000000e+00> : vector<8x128xf32>
    %44 = tpu.matmul %43, %13, %cst_22 {dimension_numbers = #tpu.dot_dimension_numbers<[1], [0], [0], [1], [0, 0, 1, 1], [], []>} : vector<8x32xf32>, vector<32x128xf32>, vector<8x128xf32> -> vector<8x128xf32>
    %cst_23 = arith.constant dense<0.000000e+00> : vector<8x128xf32>
    %45 = tpu.matmul %25, %15, %cst_23 {dimension_numbers = #tpu.dot_dimension_numbers<[1], [0], [0], [1], [0, 0, 1, 1], [], []>} : vector<8x32xf32>, vector<32x128xf32>, vector<8x128xf32> -> vector<8x128xf32>
    %46 = arith.addf %44, %45 : vector<8x128xf32>
    %47 = arith.addf %46, %19 : vector<8x128xf32>
    %48 = arith.mulf %47, %8 : vector<8x128xf32>
    %49 = math.tanh %48 : vector<8x128xf32>
    %50 = arith.mulf %8, %49 : vector<8x128xf32>
    %51 = arith.addf %50, %11 : vector<8x128xf32>
    %52 = vector.extract_strided_slice %51 {offsets = [0, 0], sizes = [8, 32], strides = [1, 1]} : vector<8x128xf32> to vector<8x32xf32>
    %53 = vector.extract_strided_slice %51 {offsets = [0, 32], sizes = [8, 32], strides = [1, 1]} : vector<8x128xf32> to vector<8x32xf32>
    %54 = vector.extract_strided_slice %51 {offsets = [0, 64], sizes = [8, 32], strides = [1, 1]} : vector<8x128xf32> to vector<8x32xf32>
    %55 = vector.extract_strided_slice %51 {offsets = [0, 96], sizes = [8, 32], strides = [1, 1]} : vector<8x128xf32> to vector<8x32xf32>
    %56 = arith.mulf %53, %27 : vector<8x32xf32>
    %57 = arith.mulf %52, %54 : vector<8x32xf32>
    %58 = arith.addf %56, %57 : vector<8x32xf32>
    %59 = math.tanh %58 : vector<8x32xf32>
    %60 = arith.mulf %55, %59 : vector<8x32xf32>
    %61 = vector.extract_strided_slice %23 {offsets = [8, 0], sizes = [8, 128], strides = [1, 1]} : vector<64x128xf32> to vector<8x128xf32>
    %cst_24 = arith.constant dense<0.000000e+00> : vector<8x128xf32>
    %62 = tpu.matmul %43, %14, %cst_24 {dimension_numbers = #tpu.dot_dimension_numbers<[1], [0], [0], [1], [0, 0, 1, 1], [], []>} : vector<8x32xf32>, vector<32x128xf32>, vector<8x128xf32> -> vector<8x128xf32>
    %63 = arith.addf %61, %62 : vector<8x128xf32>
    %64 = arith.mulf %63, %8 : vector<8x128xf32>
    %65 = math.tanh %64 : vector<8x128xf32>
    %66 = arith.mulf %8, %65 : vector<8x128xf32>
    %67 = arith.addf %66, %11 : vector<8x128xf32>
    %68 = vector.extract_strided_slice %67 {offsets = [0, 0], sizes = [8, 32], strides = [1, 1]} : vector<8x128xf32> to vector<8x32xf32>
    %69 = vector.extract_strided_slice %67 {offsets = [0, 32], sizes = [8, 32], strides = [1, 1]} : vector<8x128xf32> to vector<8x32xf32>
    %70 = vector.extract_strided_slice %67 {offsets = [0, 64], sizes = [8, 32], strides = [1, 1]} : vector<8x128xf32> to vector<8x32xf32>
    %71 = vector.extract_strided_slice %67 {offsets = [0, 96], sizes = [8, 32], strides = [1, 1]} : vector<8x128xf32> to vector<8x32xf32>
    %72 = arith.mulf %69, %41 : vector<8x32xf32>
    %73 = arith.mulf %68, %70 : vector<8x32xf32>
    %74 = arith.addf %72, %73 : vector<8x32xf32>
    %75 = math.tanh %74 : vector<8x32xf32>
    %76 = arith.mulf %71, %75 : vector<8x32xf32>
    %cst_25 = arith.constant dense<0.000000e+00> : vector<8x128xf32>
    %77 = tpu.matmul %76, %13, %cst_25 {dimension_numbers = #tpu.dot_dimension_numbers<[1], [0], [0], [1], [0, 0, 1, 1], [], []>} : vector<8x32xf32>, vector<32x128xf32>, vector<8x128xf32> -> vector<8x128xf32>
    %cst_26 = arith.constant dense<0.000000e+00> : vector<8x128xf32>
    %78 = tpu.matmul %60, %15, %cst_26 {dimension_numbers = #tpu.dot_dimension_numbers<[1], [0], [0], [1], [0, 0, 1, 1], [], []>} : vector<8x32xf32>, vector<32x128xf32>, vector<8x128xf32> -> vector<8x128xf32>
    %79 = arith.addf %77, %78 : vector<8x128xf32>
    %80 = arith.addf %79, %19 : vector<8x128xf32>
    %81 = arith.mulf %80, %8 : vector<8x128xf32>
    %82 = math.tanh %81 : vector<8x128xf32>
    %83 = arith.mulf %8, %82 : vector<8x128xf32>
    %84 = arith.addf %83, %11 : vector<8x128xf32>
    %85 = vector.extract_strided_slice %84 {offsets = [0, 0], sizes = [8, 32], strides = [1, 1]} : vector<8x128xf32> to vector<8x32xf32>
    %86 = vector.extract_strided_slice %84 {offsets = [0, 32], sizes = [8, 32], strides = [1, 1]} : vector<8x128xf32> to vector<8x32xf32>
    %87 = vector.extract_strided_slice %84 {offsets = [0, 64], sizes = [8, 32], strides = [1, 1]} : vector<8x128xf32> to vector<8x32xf32>
    %88 = vector.extract_strided_slice %84 {offsets = [0, 96], sizes = [8, 32], strides = [1, 1]} : vector<8x128xf32> to vector<8x32xf32>
    %89 = arith.mulf %86, %58 : vector<8x32xf32>
    %90 = arith.mulf %85, %87 : vector<8x32xf32>
    %91 = arith.addf %89, %90 : vector<8x32xf32>
    %92 = math.tanh %91 : vector<8x32xf32>
    %93 = arith.mulf %88, %92 : vector<8x32xf32>
    %94 = vector.extract_strided_slice %23 {offsets = [16, 0], sizes = [8, 128], strides = [1, 1]} : vector<64x128xf32> to vector<8x128xf32>
    %cst_27 = arith.constant dense<0.000000e+00> : vector<8x128xf32>
    %95 = tpu.matmul %76, %14, %cst_27 {dimension_numbers = #tpu.dot_dimension_numbers<[1], [0], [0], [1], [0, 0, 1, 1], [], []>} : vector<8x32xf32>, vector<32x128xf32>, vector<8x128xf32> -> vector<8x128xf32>
    %96 = arith.addf %94, %95 : vector<8x128xf32>
    %97 = arith.mulf %96, %8 : vector<8x128xf32>
    %98 = math.tanh %97 : vector<8x128xf32>
    %99 = arith.mulf %8, %98 : vector<8x128xf32>
    %100 = arith.addf %99, %11 : vector<8x128xf32>
    %101 = vector.extract_strided_slice %100 {offsets = [0, 0], sizes = [8, 32], strides = [1, 1]} : vector<8x128xf32> to vector<8x32xf32>
    %102 = vector.extract_strided_slice %100 {offsets = [0, 32], sizes = [8, 32], strides = [1, 1]} : vector<8x128xf32> to vector<8x32xf32>
    %103 = vector.extract_strided_slice %100 {offsets = [0, 64], sizes = [8, 32], strides = [1, 1]} : vector<8x128xf32> to vector<8x32xf32>
    %104 = vector.extract_strided_slice %100 {offsets = [0, 96], sizes = [8, 32], strides = [1, 1]} : vector<8x128xf32> to vector<8x32xf32>
    %105 = arith.mulf %102, %74 : vector<8x32xf32>
    %106 = arith.mulf %101, %103 : vector<8x32xf32>
    %107 = arith.addf %105, %106 : vector<8x32xf32>
    %108 = math.tanh %107 : vector<8x32xf32>
    %109 = arith.mulf %104, %108 : vector<8x32xf32>
    %cst_28 = arith.constant dense<0.000000e+00> : vector<8x128xf32>
    %110 = tpu.matmul %109, %13, %cst_28 {dimension_numbers = #tpu.dot_dimension_numbers<[1], [0], [0], [1], [0, 0, 1, 1], [], []>} : vector<8x32xf32>, vector<32x128xf32>, vector<8x128xf32> -> vector<8x128xf32>
    %cst_29 = arith.constant dense<0.000000e+00> : vector<8x128xf32>
    %111 = tpu.matmul %93, %15, %cst_29 {dimension_numbers = #tpu.dot_dimension_numbers<[1], [0], [0], [1], [0, 0, 1, 1], [], []>} : vector<8x32xf32>, vector<32x128xf32>, vector<8x128xf32> -> vector<8x128xf32>
    %112 = arith.addf %110, %111 : vector<8x128xf32>
    %113 = arith.addf %112, %19 : vector<8x128xf32>
    %114 = arith.mulf %113, %8 : vector<8x128xf32>
    %115 = math.tanh %114 : vector<8x128xf32>
    %116 = arith.mulf %8, %115 : vector<8x128xf32>
    %117 = arith.addf %116, %11 : vector<8x128xf32>
    %118 = vector.extract_strided_slice %117 {offsets = [0, 0], sizes = [8, 32], strides = [1, 1]} : vector<8x128xf32> to vector<8x32xf32>
    %119 = vector.extract_strided_slice %117 {offsets = [0, 32], sizes = [8, 32], strides = [1, 1]} : vector<8x128xf32> to vector<8x32xf32>
    %120 = vector.extract_strided_slice %117 {offsets = [0, 64], sizes = [8, 32], strides = [1, 1]} : vector<8x128xf32> to vector<8x32xf32>
    %121 = vector.extract_strided_slice %117 {offsets = [0, 96], sizes = [8, 32], strides = [1, 1]} : vector<8x128xf32> to vector<8x32xf32>
    %122 = arith.mulf %119, %91 : vector<8x32xf32>
    %123 = arith.mulf %118, %120 : vector<8x32xf32>
    %124 = arith.addf %122, %123 : vector<8x32xf32>
    %125 = math.tanh %124 : vector<8x32xf32>
    %126 = arith.mulf %121, %125 : vector<8x32xf32>
    %127 = vector.extract_strided_slice %23 {offsets = [24, 0], sizes = [8, 128], strides = [1, 1]} : vector<64x128xf32> to vector<8x128xf32>
    %cst_30 = arith.constant dense<0.000000e+00> : vector<8x128xf32>
    %128 = tpu.matmul %109, %14, %cst_30 {dimension_numbers = #tpu.dot_dimension_numbers<[1], [0], [0], [1], [0, 0, 1, 1], [], []>} : vector<8x32xf32>, vector<32x128xf32>, vector<8x128xf32> -> vector<8x128xf32>
    %129 = arith.addf %127, %128 : vector<8x128xf32>
    %130 = arith.mulf %129, %8 : vector<8x128xf32>
    %131 = math.tanh %130 : vector<8x128xf32>
    %132 = arith.mulf %8, %131 : vector<8x128xf32>
    %133 = arith.addf %132, %11 : vector<8x128xf32>
    %134 = vector.extract_strided_slice %133 {offsets = [0, 0], sizes = [8, 32], strides = [1, 1]} : vector<8x128xf32> to vector<8x32xf32>
    %135 = vector.extract_strided_slice %133 {offsets = [0, 32], sizes = [8, 32], strides = [1, 1]} : vector<8x128xf32> to vector<8x32xf32>
    %136 = vector.extract_strided_slice %133 {offsets = [0, 64], sizes = [8, 32], strides = [1, 1]} : vector<8x128xf32> to vector<8x32xf32>
    %137 = vector.extract_strided_slice %133 {offsets = [0, 96], sizes = [8, 32], strides = [1, 1]} : vector<8x128xf32> to vector<8x32xf32>
    %138 = arith.mulf %135, %107 : vector<8x32xf32>
    %139 = arith.mulf %134, %136 : vector<8x32xf32>
    %140 = arith.addf %138, %139 : vector<8x32xf32>
    %141 = math.tanh %140 : vector<8x32xf32>
    %142 = arith.mulf %137, %141 : vector<8x32xf32>
    %cst_31 = arith.constant dense<0.000000e+00> : vector<8x128xf32>
    %143 = tpu.matmul %142, %13, %cst_31 {dimension_numbers = #tpu.dot_dimension_numbers<[1], [0], [0], [1], [0, 0, 1, 1], [], []>} : vector<8x32xf32>, vector<32x128xf32>, vector<8x128xf32> -> vector<8x128xf32>
    %cst_32 = arith.constant dense<0.000000e+00> : vector<8x128xf32>
    %144 = tpu.matmul %126, %15, %cst_32 {dimension_numbers = #tpu.dot_dimension_numbers<[1], [0], [0], [1], [0, 0, 1, 1], [], []>} : vector<8x32xf32>, vector<32x128xf32>, vector<8x128xf32> -> vector<8x128xf32>
    %145 = arith.addf %143, %144 : vector<8x128xf32>
    %146 = arith.addf %145, %19 : vector<8x128xf32>
    %147 = arith.mulf %146, %8 : vector<8x128xf32>
    %148 = math.tanh %147 : vector<8x128xf32>
    %149 = arith.mulf %8, %148 : vector<8x128xf32>
    %150 = arith.addf %149, %11 : vector<8x128xf32>
    %151 = vector.extract_strided_slice %150 {offsets = [0, 0], sizes = [8, 32], strides = [1, 1]} : vector<8x128xf32> to vector<8x32xf32>
    %152 = vector.extract_strided_slice %150 {offsets = [0, 32], sizes = [8, 32], strides = [1, 1]} : vector<8x128xf32> to vector<8x32xf32>
    %153 = vector.extract_strided_slice %150 {offsets = [0, 64], sizes = [8, 32], strides = [1, 1]} : vector<8x128xf32> to vector<8x32xf32>
    %154 = vector.extract_strided_slice %150 {offsets = [0, 96], sizes = [8, 32], strides = [1, 1]} : vector<8x128xf32> to vector<8x32xf32>
    %155 = arith.mulf %152, %124 : vector<8x32xf32>
    %156 = arith.mulf %151, %153 : vector<8x32xf32>
    %157 = arith.addf %155, %156 : vector<8x32xf32>
    %158 = math.tanh %157 : vector<8x32xf32>
    %159 = arith.mulf %154, %158 : vector<8x32xf32>
    %160 = vector.extract_strided_slice %23 {offsets = [32, 0], sizes = [8, 128], strides = [1, 1]} : vector<64x128xf32> to vector<8x128xf32>
    %cst_33 = arith.constant dense<0.000000e+00> : vector<8x128xf32>
    %161 = tpu.matmul %142, %14, %cst_33 {dimension_numbers = #tpu.dot_dimension_numbers<[1], [0], [0], [1], [0, 0, 1, 1], [], []>} : vector<8x32xf32>, vector<32x128xf32>, vector<8x128xf32> -> vector<8x128xf32>
    %162 = arith.addf %160, %161 : vector<8x128xf32>
    %163 = arith.mulf %162, %8 : vector<8x128xf32>
    %164 = math.tanh %163 : vector<8x128xf32>
    %165 = arith.mulf %8, %164 : vector<8x128xf32>
    %166 = arith.addf %165, %11 : vector<8x128xf32>
    %167 = vector.extract_strided_slice %166 {offsets = [0, 0], sizes = [8, 32], strides = [1, 1]} : vector<8x128xf32> to vector<8x32xf32>
    %168 = vector.extract_strided_slice %166 {offsets = [0, 32], sizes = [8, 32], strides = [1, 1]} : vector<8x128xf32> to vector<8x32xf32>
    %169 = vector.extract_strided_slice %166 {offsets = [0, 64], sizes = [8, 32], strides = [1, 1]} : vector<8x128xf32> to vector<8x32xf32>
    %170 = vector.extract_strided_slice %166 {offsets = [0, 96], sizes = [8, 32], strides = [1, 1]} : vector<8x128xf32> to vector<8x32xf32>
    %171 = arith.mulf %168, %140 : vector<8x32xf32>
    %172 = arith.mulf %167, %169 : vector<8x32xf32>
    %173 = arith.addf %171, %172 : vector<8x32xf32>
    %174 = math.tanh %173 : vector<8x32xf32>
    %175 = arith.mulf %170, %174 : vector<8x32xf32>
    %cst_34 = arith.constant dense<0.000000e+00> : vector<8x128xf32>
    %176 = tpu.matmul %175, %13, %cst_34 {dimension_numbers = #tpu.dot_dimension_numbers<[1], [0], [0], [1], [0, 0, 1, 1], [], []>} : vector<8x32xf32>, vector<32x128xf32>, vector<8x128xf32> -> vector<8x128xf32>
    %cst_35 = arith.constant dense<0.000000e+00> : vector<8x128xf32>
    %177 = tpu.matmul %159, %15, %cst_35 {dimension_numbers = #tpu.dot_dimension_numbers<[1], [0], [0], [1], [0, 0, 1, 1], [], []>} : vector<8x32xf32>, vector<32x128xf32>, vector<8x128xf32> -> vector<8x128xf32>
    %178 = arith.addf %176, %177 : vector<8x128xf32>
    %179 = arith.addf %178, %19 : vector<8x128xf32>
    %180 = arith.mulf %179, %8 : vector<8x128xf32>
    %181 = math.tanh %180 : vector<8x128xf32>
    %182 = arith.mulf %8, %181 : vector<8x128xf32>
    %183 = arith.addf %182, %11 : vector<8x128xf32>
    %184 = vector.extract_strided_slice %183 {offsets = [0, 0], sizes = [8, 32], strides = [1, 1]} : vector<8x128xf32> to vector<8x32xf32>
    %185 = vector.extract_strided_slice %183 {offsets = [0, 32], sizes = [8, 32], strides = [1, 1]} : vector<8x128xf32> to vector<8x32xf32>
    %186 = vector.extract_strided_slice %183 {offsets = [0, 64], sizes = [8, 32], strides = [1, 1]} : vector<8x128xf32> to vector<8x32xf32>
    %187 = vector.extract_strided_slice %183 {offsets = [0, 96], sizes = [8, 32], strides = [1, 1]} : vector<8x128xf32> to vector<8x32xf32>
    %188 = arith.mulf %185, %157 : vector<8x32xf32>
    %189 = arith.mulf %184, %186 : vector<8x32xf32>
    %190 = arith.addf %188, %189 : vector<8x32xf32>
    %191 = math.tanh %190 : vector<8x32xf32>
    %192 = arith.mulf %187, %191 : vector<8x32xf32>
    %193 = vector.extract_strided_slice %23 {offsets = [40, 0], sizes = [8, 128], strides = [1, 1]} : vector<64x128xf32> to vector<8x128xf32>
    %cst_36 = arith.constant dense<0.000000e+00> : vector<8x128xf32>
    %194 = tpu.matmul %175, %14, %cst_36 {dimension_numbers = #tpu.dot_dimension_numbers<[1], [0], [0], [1], [0, 0, 1, 1], [], []>} : vector<8x32xf32>, vector<32x128xf32>, vector<8x128xf32> -> vector<8x128xf32>
    %195 = arith.addf %193, %194 : vector<8x128xf32>
    %196 = arith.mulf %195, %8 : vector<8x128xf32>
    %197 = math.tanh %196 : vector<8x128xf32>
    %198 = arith.mulf %8, %197 : vector<8x128xf32>
    %199 = arith.addf %198, %11 : vector<8x128xf32>
    %200 = vector.extract_strided_slice %199 {offsets = [0, 0], sizes = [8, 32], strides = [1, 1]} : vector<8x128xf32> to vector<8x32xf32>
    %201 = vector.extract_strided_slice %199 {offsets = [0, 32], sizes = [8, 32], strides = [1, 1]} : vector<8x128xf32> to vector<8x32xf32>
    %202 = vector.extract_strided_slice %199 {offsets = [0, 64], sizes = [8, 32], strides = [1, 1]} : vector<8x128xf32> to vector<8x32xf32>
    %203 = vector.extract_strided_slice %199 {offsets = [0, 96], sizes = [8, 32], strides = [1, 1]} : vector<8x128xf32> to vector<8x32xf32>
    %204 = arith.mulf %201, %173 : vector<8x32xf32>
    %205 = arith.mulf %200, %202 : vector<8x32xf32>
    %206 = arith.addf %204, %205 : vector<8x32xf32>
    %207 = math.tanh %206 : vector<8x32xf32>
    %208 = arith.mulf %203, %207 : vector<8x32xf32>
    %cst_37 = arith.constant dense<0.000000e+00> : vector<8x128xf32>
    %209 = tpu.matmul %208, %13, %cst_37 {dimension_numbers = #tpu.dot_dimension_numbers<[1], [0], [0], [1], [0, 0, 1, 1], [], []>} : vector<8x32xf32>, vector<32x128xf32>, vector<8x128xf32> -> vector<8x128xf32>
    %cst_38 = arith.constant dense<0.000000e+00> : vector<8x128xf32>
    %210 = tpu.matmul %192, %15, %cst_38 {dimension_numbers = #tpu.dot_dimension_numbers<[1], [0], [0], [1], [0, 0, 1, 1], [], []>} : vector<8x32xf32>, vector<32x128xf32>, vector<8x128xf32> -> vector<8x128xf32>
    %211 = arith.addf %209, %210 : vector<8x128xf32>
    %212 = arith.addf %211, %19 : vector<8x128xf32>
    %213 = arith.mulf %212, %8 : vector<8x128xf32>
    %214 = math.tanh %213 : vector<8x128xf32>
    %215 = arith.mulf %8, %214 : vector<8x128xf32>
    %216 = arith.addf %215, %11 : vector<8x128xf32>
    %217 = vector.extract_strided_slice %216 {offsets = [0, 0], sizes = [8, 32], strides = [1, 1]} : vector<8x128xf32> to vector<8x32xf32>
    %218 = vector.extract_strided_slice %216 {offsets = [0, 32], sizes = [8, 32], strides = [1, 1]} : vector<8x128xf32> to vector<8x32xf32>
    %219 = vector.extract_strided_slice %216 {offsets = [0, 64], sizes = [8, 32], strides = [1, 1]} : vector<8x128xf32> to vector<8x32xf32>
    %220 = vector.extract_strided_slice %216 {offsets = [0, 96], sizes = [8, 32], strides = [1, 1]} : vector<8x128xf32> to vector<8x32xf32>
    %221 = arith.mulf %218, %190 : vector<8x32xf32>
    %222 = arith.mulf %217, %219 : vector<8x32xf32>
    %223 = arith.addf %221, %222 : vector<8x32xf32>
    %224 = math.tanh %223 : vector<8x32xf32>
    %225 = arith.mulf %220, %224 : vector<8x32xf32>
    %226 = vector.extract_strided_slice %23 {offsets = [48, 0], sizes = [8, 128], strides = [1, 1]} : vector<64x128xf32> to vector<8x128xf32>
    %cst_39 = arith.constant dense<0.000000e+00> : vector<8x128xf32>
    %227 = tpu.matmul %208, %14, %cst_39 {dimension_numbers = #tpu.dot_dimension_numbers<[1], [0], [0], [1], [0, 0, 1, 1], [], []>} : vector<8x32xf32>, vector<32x128xf32>, vector<8x128xf32> -> vector<8x128xf32>
    %228 = arith.addf %226, %227 : vector<8x128xf32>
    %229 = arith.mulf %228, %8 : vector<8x128xf32>
    %230 = math.tanh %229 : vector<8x128xf32>
    %231 = arith.mulf %8, %230 : vector<8x128xf32>
    %232 = arith.addf %231, %11 : vector<8x128xf32>
    %233 = vector.extract_strided_slice %232 {offsets = [0, 0], sizes = [8, 32], strides = [1, 1]} : vector<8x128xf32> to vector<8x32xf32>
    %234 = vector.extract_strided_slice %232 {offsets = [0, 32], sizes = [8, 32], strides = [1, 1]} : vector<8x128xf32> to vector<8x32xf32>
    %235 = vector.extract_strided_slice %232 {offsets = [0, 64], sizes = [8, 32], strides = [1, 1]} : vector<8x128xf32> to vector<8x32xf32>
    %236 = vector.extract_strided_slice %232 {offsets = [0, 96], sizes = [8, 32], strides = [1, 1]} : vector<8x128xf32> to vector<8x32xf32>
    %237 = arith.mulf %234, %206 : vector<8x32xf32>
    %238 = arith.mulf %233, %235 : vector<8x32xf32>
    %239 = arith.addf %237, %238 : vector<8x32xf32>
    %240 = math.tanh %239 : vector<8x32xf32>
    %241 = arith.mulf %236, %240 : vector<8x32xf32>
    %cst_40 = arith.constant dense<0.000000e+00> : vector<8x128xf32>
    %242 = tpu.matmul %241, %13, %cst_40 {dimension_numbers = #tpu.dot_dimension_numbers<[1], [0], [0], [1], [0, 0, 1, 1], [], []>} : vector<8x32xf32>, vector<32x128xf32>, vector<8x128xf32> -> vector<8x128xf32>
    %cst_41 = arith.constant dense<0.000000e+00> : vector<8x128xf32>
    %243 = tpu.matmul %225, %15, %cst_41 {dimension_numbers = #tpu.dot_dimension_numbers<[1], [0], [0], [1], [0, 0, 1, 1], [], []>} : vector<8x32xf32>, vector<32x128xf32>, vector<8x128xf32> -> vector<8x128xf32>
    %244 = arith.addf %242, %243 : vector<8x128xf32>
    %245 = arith.addf %244, %19 : vector<8x128xf32>
    %246 = arith.mulf %245, %8 : vector<8x128xf32>
    %247 = math.tanh %246 : vector<8x128xf32>
    %248 = arith.mulf %8, %247 : vector<8x128xf32>
    %249 = arith.addf %248, %11 : vector<8x128xf32>
    %250 = vector.extract_strided_slice %249 {offsets = [0, 0], sizes = [8, 32], strides = [1, 1]} : vector<8x128xf32> to vector<8x32xf32>
    %251 = vector.extract_strided_slice %249 {offsets = [0, 32], sizes = [8, 32], strides = [1, 1]} : vector<8x128xf32> to vector<8x32xf32>
    %252 = vector.extract_strided_slice %249 {offsets = [0, 64], sizes = [8, 32], strides = [1, 1]} : vector<8x128xf32> to vector<8x32xf32>
    %253 = vector.extract_strided_slice %249 {offsets = [0, 96], sizes = [8, 32], strides = [1, 1]} : vector<8x128xf32> to vector<8x32xf32>
    %254 = arith.mulf %251, %223 : vector<8x32xf32>
    %255 = arith.mulf %250, %252 : vector<8x32xf32>
    %256 = arith.addf %254, %255 : vector<8x32xf32>
    %257 = math.tanh %256 : vector<8x32xf32>
    %258 = arith.mulf %253, %257 : vector<8x32xf32>
    %259 = vector.extract_strided_slice %23 {offsets = [56, 0], sizes = [8, 128], strides = [1, 1]} : vector<64x128xf32> to vector<8x128xf32>
    %cst_42 = arith.constant dense<0.000000e+00> : vector<8x128xf32>
    %260 = tpu.matmul %241, %14, %cst_42 {dimension_numbers = #tpu.dot_dimension_numbers<[1], [0], [0], [1], [0, 0, 1, 1], [], []>} : vector<8x32xf32>, vector<32x128xf32>, vector<8x128xf32> -> vector<8x128xf32>
    %261 = arith.addf %259, %260 : vector<8x128xf32>
    %262 = arith.mulf %261, %8 : vector<8x128xf32>
    %263 = math.tanh %262 : vector<8x128xf32>
    %264 = arith.mulf %8, %263 : vector<8x128xf32>
    %265 = arith.addf %264, %11 : vector<8x128xf32>
    %266 = vector.extract_strided_slice %265 {offsets = [0, 0], sizes = [8, 32], strides = [1, 1]} : vector<8x128xf32> to vector<8x32xf32>
    %267 = vector.extract_strided_slice %265 {offsets = [0, 32], sizes = [8, 32], strides = [1, 1]} : vector<8x128xf32> to vector<8x32xf32>
    %268 = vector.extract_strided_slice %265 {offsets = [0, 64], sizes = [8, 32], strides = [1, 1]} : vector<8x128xf32> to vector<8x32xf32>
    %269 = vector.extract_strided_slice %265 {offsets = [0, 96], sizes = [8, 32], strides = [1, 1]} : vector<8x128xf32> to vector<8x32xf32>
    %270 = arith.mulf %267, %239 : vector<8x32xf32>
    %271 = arith.mulf %266, %268 : vector<8x32xf32>
    %272 = arith.addf %270, %271 : vector<8x32xf32>
    %273 = math.tanh %272 : vector<8x32xf32>
    %274 = arith.mulf %269, %273 : vector<8x32xf32>
    %cst_43 = arith.constant dense<0.000000e+00> : vector<8x128xf32>
    %275 = tpu.matmul %274, %13, %cst_43 {dimension_numbers = #tpu.dot_dimension_numbers<[1], [0], [0], [1], [0, 0, 1, 1], [], []>} : vector<8x32xf32>, vector<32x128xf32>, vector<8x128xf32> -> vector<8x128xf32>
    %cst_44 = arith.constant dense<0.000000e+00> : vector<8x128xf32>
    %276 = tpu.matmul %258, %15, %cst_44 {dimension_numbers = #tpu.dot_dimension_numbers<[1], [0], [0], [1], [0, 0, 1, 1], [], []>} : vector<8x32xf32>, vector<32x128xf32>, vector<8x128xf32> -> vector<8x128xf32>
    %277 = arith.addf %275, %276 : vector<8x128xf32>
    %278 = arith.addf %277, %19 : vector<8x128xf32>
    %279 = arith.mulf %278, %8 : vector<8x128xf32>
    %280 = math.tanh %279 : vector<8x128xf32>
    %281 = arith.mulf %8, %280 : vector<8x128xf32>
    %282 = arith.addf %281, %11 : vector<8x128xf32>
    %283 = vector.extract_strided_slice %282 {offsets = [0, 0], sizes = [8, 32], strides = [1, 1]} : vector<8x128xf32> to vector<8x32xf32>
    %284 = vector.extract_strided_slice %282 {offsets = [0, 32], sizes = [8, 32], strides = [1, 1]} : vector<8x128xf32> to vector<8x32xf32>
    %285 = vector.extract_strided_slice %282 {offsets = [0, 64], sizes = [8, 32], strides = [1, 1]} : vector<8x128xf32> to vector<8x32xf32>
    %286 = vector.extract_strided_slice %282 {offsets = [0, 96], sizes = [8, 32], strides = [1, 1]} : vector<8x128xf32> to vector<8x32xf32>
    %287 = arith.mulf %284, %256 : vector<8x32xf32>
    %288 = arith.mulf %283, %285 : vector<8x32xf32>
    %289 = arith.addf %287, %288 : vector<8x32xf32>
    %290 = math.tanh %289 : vector<8x32xf32>
    %291 = arith.mulf %286, %290 : vector<8x32xf32>
    %c0_45 = arith.constant 0 : index
    %c0_46 = arith.constant 0 : index
    %292 = vector.load %arg7[%c0_45, %c0_46] : memref<32x128xf32, #tpu.memory_space<vmem>>, vector<32x128xf32>
    %cst_47 = arith.constant dense<0.000000e+00> : vector<8x128xf32>
    %293 = tpu.matmul %291, %292, %cst_47 {dimension_numbers = #tpu.dot_dimension_numbers<[1], [0], [0], [1], [0, 0, 1, 1], [], []>} : vector<8x32xf32>, vector<32x128xf32>, vector<8x128xf32> -> vector<8x128xf32>
    %c0_48 = arith.constant 0 : index
    %c0_49 = arith.constant 0 : index
    %294 = vector.load %arg8[%c0_48, %c0_49] : memref<1x128xf32, #tpu.memory_space<vmem>>, vector<1x128xf32>
    %295 = vector.broadcast %294 : vector<1x128xf32> to vector<8x128xf32>
    %296 = arith.addf %293, %295 : vector<8x128xf32>
    %297 = tpu.concatenate %274, %291, %272, %289, %296 in 1 : vector<8x32xf32>, vector<8x32xf32>, vector<8x32xf32>, vector<8x32xf32>, vector<8x128xf32> -> vector<8x256xf32>
    %c0_50 = arith.constant 0 : index
    %c0_51 = arith.constant 0 : index
    %298 = vector.load %arg9[%c0_50, %c0_51] : memref<8x256xf32, #tpu.memory_space<vmem>>, vector<8x256xf32>
    tpu.vector_store %arg9[%c0_50, %c0_51], %297 {strides = array<i32>} : memref<8x256xf32, #tpu.memory_space<vmem>>, vector<8x256xf32>,
    return
  }
}

</mosaic_0001>

<llo_original>
// kernel: tpu_custom_call.1
$region0: #{tpu_custom_call.1}
  #allocation0 [shape = 'u32[]', space=smem, size = 0x4, offset = 0x4, fixed_abs, tag = 'smem constant byte address 0x4 - core index']
  #allocation1 [shape = 'u32[72,128]{1,0:T(1,128)}', space=vmem, size = 0x9000, scoped, tag = 'internal scratch']
  %s0 = inlined_call_operand.vmem [shape: f32[64,5], index: 0, kind: input, shape index: {}]
  %s1 = inlined_call_operand.vmem [shape: f32[5,128], index: 1, kind: input, shape index: {}]
  %s2 = inlined_call_operand.vmem [shape: f32[32,128], index: 2, kind: input, shape index: {}]
  %s3 = inlined_call_operand.vmem [shape: f32[1,128], index: 3, kind: input, shape index: {}]
  %s4 = inlined_call_operand.vmem [shape: f32[32,128], index: 4, kind: input, shape index: {}]
  %s5 = inlined_call_operand.hbm [shape: f32[32,128], index: 5, kind: input, shape index: {}]
  %s6 = inlined_call_operand.vmem [shape: f32[1,128], index: 6, kind: input, shape index: {}]
  %s7 = inlined_call_operand.hbm [shape: f32[32,128], index: 7, kind: input, shape index: {}]
  %s8 = inlined_call_operand.vmem [shape: f32[1,128], index: 8, kind: input, shape index: {}]
  %s9 = inlined_call_operand.hbm [shape: f32[8,256], index: 9, kind: output, shape index: {}]
  %s10 = sld [smem:[#allocation0]]
  $region54: #{tpu_custom_call.1} parent=0
    _
  %s12 = ssub.s32 1, %s10
  %s13 = scalar_select 0, %s12, %s10
  $region1: #{tpu_custom_call.1} parent=0
    #allocation2 [shape = 'u8[16384]{0}', space=vmem, size = 0x4000, scoped, tag = 'input window, operand 5, single buffered']
    #allocation3 [shape = 's32[1]{0}', space=sflag, size = 0x4, scoped, tag = 'scoped memory for tpu_custom_call.1']
    #allocation4 [shape = 's32[1]{0}', space=sflag, size = 0x4, scoped, tag = 'scoped memory for tpu_custom_call.1']
    #allocation5 [shape = 'u8[16384]{0}', space=vmem, size = 0x4000, scoped, tag = 'input window, operand 7, single buffered']
    #allocation6 [shape = 's32[1]{0}', space=sflag, size = 0x4, scoped, tag = 'scoped memory for tpu_custom_call.1']
    #allocation7 [shape = 'u8[8192]{0}', space=vmem, size = 0x2000, scoped, tag = 'output window, operand 0, single buffered']
    %14 = vsyncpa [#allocation3], 0
    %15 = vsyncpa [#allocation6], 0
    %16 = vsyncpa [#allocation4], 0
    // Predicated region
    $region2: #{tpu_custom_call.1} parent=1 // pred_check
      _
    $region3: #{tpu_custom_call.1} parent=1 // pred_check_branch
      %18 = sbr.rel (0) target = $region5
    $region4: #{tpu_custom_call.1} parent=1 // pred_region
      _
    $region5: #{tpu_custom_call.1} parent=1 // pred_fallthru
      _
    // Predicated region
    $region6: #{tpu_custom_call.1} parent=1 // pred_check
      _
    $region7: #{tpu_custom_call.1} parent=1 // pred_check_branch
      %20 = sbr.rel (0) target = $region9
    $region8: #{tpu_custom_call.1} parent=1 // pred_region
      _
    $region9: #{tpu_custom_call.1} parent=1 // pred_fallthru
      _
    // Predicated region
    $region10: #{tpu_custom_call.1} parent=1 // pred_check
      _
    $region11: #{tpu_custom_call.1} parent=1 // pred_check_branch
      %22 = sbr.rel (0) target = $region13
    $region12: #{tpu_custom_call.1} parent=1 // pred_region
      _
    $region13: #{tpu_custom_call.1} parent=1 // pred_fallthru
      _
    // Predicated region
    $region14: #{tpu_custom_call.1} parent=1 // pred_check
      _
    $region15: #{tpu_custom_call.1} parent=1 // pred_check_branch
      %24 = sbr.rel (0) target = $region17
    $region16: #{tpu_custom_call.1} parent=1 // pred_region
      _
    $region17: #{tpu_custom_call.1} parent=1 // pred_fallthru
      _
    // Predicated region
    $region18: #{tpu_custom_call.1} parent=1 // pred_check
      _
    $region19: #{tpu_custom_call.1} parent=1 // pred_check_branch
      %26 = sbr.rel (0) target = $region21
    $region20: #{tpu_custom_call.1} parent=1 // pred_region
      _
    $region21: #{tpu_custom_call.1} parent=1 // pred_fallthru
      _
    // Predicated region
    $region22: #{tpu_custom_call.1} parent=1 // pred_check
      _
    $region23: #{tpu_custom_call.1} parent=1 // pred_check_branch
      %28 = sbr.rel (0) target = $region25
    $region24: #{tpu_custom_call.1} parent=1 // pred_region
      %30 = vsyncadd [#allocation3], 0
      %s31 = sshll.u32 %s5, 4
      %s32 = int_to_ptr.hbm [resolvable:$true] %s31
      %s33 = sshll.u32 [#allocation2], 4
      %s34 = int_to_ptr.vmem [resolvable:$true] %s33
      %39 = dma.hbm_to_vmem [thread:$0]  %s32, 512, %s34, [#allocation3], 128, 128, 8
    $region25: #{tpu_custom_call.1} parent=1 // pred_fallthru
      _
    // Predicated region
    $region26: #{tpu_custom_call.1} parent=1 // pred_check
      _
    $region27: #{tpu_custom_call.1} parent=1 // pred_check_branch
      %41 = sbr.rel (0) target = $region29
    $region28: #{tpu_custom_call.1} parent=1 // pred_region
      _
    $region29: #{tpu_custom_call.1} parent=1 // pred_fallthru
      _
    // Predicated region
    $region30: #{tpu_custom_call.1} parent=1 // pred_check
      _
    $region31: #{tpu_custom_call.1} parent=1 // pred_check_branch
      %43 = sbr.rel (0) target = $region33
    $region32: #{tpu_custom_call.1} parent=1 // pred_region
      %45 = vsyncadd [#allocation6], 0
      %s46 = sshll.u32 %s7, 4
      %s47 = int_to_ptr.hbm [resolvable:$true] %s46
      %s48 = sshll.u32 [#allocation5], 4
      %s49 = int_to_ptr.vmem [resolvable:$true] %s48
      %54 = dma.hbm_to_vmem [thread:$0]  %s47, 512, %s49, [#allocation6], 128, 128, 8
    $region33: #{tpu_custom_call.1} parent=1 // pred_fallthru
      _
    // Predicated region
    $region34: #{tpu_custom_call.1} parent=1 // pred_check
      _
    $region35: #{tpu_custom_call.1} parent=1 // pred_check_branch
      %56 = sbr.rel (0) target = $region37
    $region36: #{tpu_custom_call.1} parent=1 // pred_region
      _
    $region37: #{tpu_custom_call.1} parent=1 // pred_fallthru
      _
    // Predicated region
    $region38: #{tpu_custom_call.1} parent=1 // pred_check
      _
    $region39: #{tpu_custom_call.1} parent=1 // pred_check_branch
      %58 = sbr.rel (0) target = $region41
    $region40: #{tpu_custom_call.1} parent=1 // pred_region
      %60 = dma.done [#allocation3], 512
    $region41: #{tpu_custom_call.1} parent=1 // pred_fallthru
      _
    // Predicated region
    $region42: #{tpu_custom_call.1} parent=1 // pred_check
      _
    $region43: #{tpu_custom_call.1} parent=1 // pred_check_branch
      %62 = sbr.rel (0) target = $region45
    $region44: #{tpu_custom_call.1} parent=1 // pred_region
      %64 = dma.done [#allocation6], 512
    $region45: #{tpu_custom_call.1} parent=1 // pred_fallthru
      _
    %v65 = vlaneseq
    %v66 = vand.u32 %v65, 127
    %vm67 = vcmp.ge.s32.totalorder %v66, 64
    %vm68 = vcmp.lt.s32.totalorder %v66, 96
    %vm69 = vmand %vm67, %vm68
    %v70 = vsel %vm69, 1.0, 0.5
    %v71 = vsel %vm69, 0.0, 0.5
    %v72 = vld [vmem:[%s1] sm:$0x1f]
    %v73 = vld [vmem:[%s4] sm:$0xff]
    %v74 = vld [vmem:[%s4 + $0x8] sm:$0xff]
    %v75 = vld [vmem:[%s4 + $0x10] sm:$0xff]
    %v76 = vld [vmem:[%s4 + $0x18] sm:$0xff]
    %v77 = vld [vmem:[%s2] sm:$0xff]
    %v78 = vld [vmem:[%s2 + $0x8] sm:$0xff]
    %v79 = vld [vmem:[%s2 + $0x10] sm:$0xff]
    %v80 = vld [vmem:[%s2 + $0x18] sm:$0xff]
    %v81 = vld [vmem:[#allocation2] sm:$0xff]
    %v82 = vld [vmem:[#allocation2 + $0x8] sm:$0xff]
    %v83 = vld [vmem:[#allocation2 + $0x10] sm:$0xff]
    %v84 = vld [vmem:[#allocation2 + $0x18] sm:$0xff]
    %v85 = vld [vmem:[%s3] sm:$0x1]
    %v86 = vld [vmem:[%s6] sm:$0x1]
    %v88 = vperm.slane %v86, 0
    %v90 = vld [vmem:[%s0] sm:$0xff]
    %v91 = vld [vmem:[%s0 + $0x8] sm:$0xff]
    %v92 = vld [vmem:[%s0 + $0x10] sm:$0xff]
    %v93 = vld [vmem:[%s0 + $0x18] sm:$0xff]
    %v94 = vld [vmem:[%s0 + $0x20] sm:$0xff]
    %v95 = vld [vmem:[%s0 + $0x28] sm:$0xff]
    %v96 = vld [vmem:[%s0 + $0x30] sm:$0xff]
    %v97 = vld [vmem:[%s0 + $0x38] sm:$0xff]
    %v99 = vperm.slane %v85, 0
    %vm101 = vcmask 39936
    %v103 = vsel %vm101, %v90, 0
    %v106 = vsel %vm101, %v91, 0
    %v109 = vsel %vm101, %v92, 0
    %v112 = vsel %vm101, %v93, 0
    %v115 = vsel %vm101, %v94, 0
    %v118 = vsel %vm101, %v95, 0
    %v121 = vsel %vm101, %v96, 0
    %v124 = vsel %vm101, %v97, 0
    %vm126 = vcmask 1044480
    %v128 = vsel %vm126, %v72, 0
    %130 = vmatpush.msra.mxu0 0.0
    %131 = vmatpush.msra.mxu0 0.0
    %132 = vmatpush.msra.mxu0 0.0
    %133 = vmatpush.msra.mxu0 0.0
    %134 = vmatpush.msra.mxu0 0.0
    %135 = vmatpush.msra.mxu0 0.0
    %136 = vmatpush.msra.mxu0 0.0
    %137 = vmatpush.msra.mxu0 0.0
    %138 = vmatpush.msra.mxu0 0.0
    %139 = vmatpush.msra.mxu0 0.0
    %140 = vmatpush.msra.mxu0 0.0
    %141 = vmatpush.msra.mxu0 0.0
    %142 = vmatpush.msra.mxu0 0.0
    %143 = vmatpush.msra.mxu0 0.0
    %144 = vmatpush.msra.mxu0 0.0
    %145 = vmatpush.msra.mxu0 %v128
    %146 = vmatmul.f32.gmra.mxu0 %v103
    %v147 = vpop.f32.mrf.mxu0
    %v148 = vadd.f32 %v99, %v147
    %149 = vmatmul.f32.gmra.mxu0 %v106
    %v150 = vpop.f32.mrf.mxu0
    %v151 = vadd.f32 %v99, %v150
    %152 = vmatmul.f32.gmra.mxu0 %v109
    %v153 = vpop.f32.mrf.mxu0
    %v154 = vadd.f32 %v99, %v153
    %155 = vmatmul.f32.gmra.mxu0 %v112
    %v156 = vpop.f32.mrf.mxu0
    %v157 = vadd.f32 %v99, %v156
    %158 = vmatmul.f32.gmra.mxu0 %v115
    %v159 = vpop.f32.mrf.mxu0
    %v160 = vadd.f32 %v99, %v159
    %161 = vmatmul.f32.gmra.mxu0 %v118
    %v162 = vpop.f32.mrf.mxu0
    %v163 = vadd.f32 %v99, %v162
    %164 = vmatmul.f32.gmra.mxu0 %v121
    %v165 = vpop.f32.mrf.mxu0
    %v166 = vadd.f32 %v99, %v165
    %167 = vmatmul.f32.gmra.mxu0 %v124
    %v168 = vpop.f32.mrf.mxu0
    %v169 = vadd.f32 %v99, %v168
    %170 = vdwg.mxu0
    %vm171 = vcmask 261120
    %v173 = vsel %vm171, 0.0, 0
    %175 = vmatpush.msra.mxu0 0.0
    %176 = vmatpush.msra.mxu0 0.0
    %177 = vmatpush.msra.mxu0 0.0
    %178 = vmatpush.msra.mxu0 0.0
    %179 = vmatpush.msra.mxu0 0.0
    %180 = vmatpush.msra.mxu0 0.0
    %181 = vmatpush.msra.mxu0 0.0
    %182 = vmatpush.msra.mxu0 0.0
    %183 = vmatpush.msra.mxu0 0.0
    %184 = vmatpush.msra.mxu0 0.0
    %185 = vmatpush.msra.mxu0 0.0
    %186 = vmatpush.msra.mxu0 0.0
    %187 = vmatpush.msra.mxu0 %v80
    %188 = vmatpush.msra.mxu0 %v79
    %189 = vmatpush.msra.mxu0 %v78
    %190 = vmatpush.msra.mxu0 %v77
    %191 = vmatmul.f32.gmra.mxu0 %v173
    %v192 = vpop.f32.mrf.mxu0
    %v193 = vadd.f32 0.0, %v192
    %194 = vdwg.mxu0
    %v195 = vadd.f32 %v148, %v193
    %v196 = vmul.f32 %v195, %v70
    %v197 = vtanh.pop %v196
    %v198 = vmul.f32 %v70, %v197
    %v199 = vadd.f32 %v198, %v71
    %v200 = vmul.f32 %v199, 0.0
    %202 = vrot.lane.b32.xlu0 %v199, 64
    %v203 = vpop.permute.xlu0 %202
    %v205 = vmul.f32 %v199, %v203
    %207 = vrot.lane.b32.xlu0 %v205, 32
    %v208 = vpop.permute.xlu0 %207
    %v210 = vadd.f32 %v200, %v208
    %v211 = vtanh.pop %v210
    %213 = vrot.lane.b32.xlu0 %v211, 64
    %v214 = vpop.permute.xlu0 %213
    %v216 = vmul.f32 %v199, %v214
    %217 = vmatpush.msra.mxu0 0.0
    %218 = vmatpush.msra.mxu0 0.0
    %219 = vmatpush.msra.mxu0 0.0
    %220 = vmatpush.msra.mxu0 0.0
    %221 = vmatpush.msra.mxu0 0.0
    %222 = vmatpush.msra.mxu0 0.0
    %223 = vmatpush.msra.mxu0 0.0
    %224 = vmatpush.msra.mxu0 0.0
    %225 = vmatpush.msra.mxu0 0.0
    %226 = vmatpush.msra.mxu0 0.0
    %227 = vmatpush.msra.mxu0 0.0
    %228 = vmatpush.msra.mxu0 0.0
    %229 = vmatpush.msra.mxu0 %v84
    %230 = vmatpush.msra.mxu0 %v83
    %231 = vmatpush.msra.mxu0 %v82
    %232 = vmatpush.msra.mxu0 %v81
    %233 = vmatmul.f32.gmra.mxu0 %v173
    %v234 = vpop.f32.mrf.mxu0
    %v235 = vadd.f32 0.0, %v234
    %236 = vdwg.mxu0
    %238 = vrot.lane.b32.xlu0 %v216, 32
    %v239 = vpop.permute.xlu0 %238
    %v240 = vsel %vm171, %v239, 0
    %242 = vmatpush.msra.mxu0 0.0
    %243 = vmatpush.msra.mxu0 0.0
    %244 = vmatpush.msra.mxu0 0.0
    %245 = vmatpush.msra.mxu0 0.0
    %246 = vmatpush.msra.mxu0 0.0
    %247 = vmatpush.msra.mxu0 0.0
    %248 = vmatpush.msra.mxu0 0.0
    %249 = vmatpush.msra.mxu0 0.0
    %250 = vmatpush.msra.mxu0 0.0
    %251 = vmatpush.msra.mxu0 0.0
    %252 = vmatpush.msra.mxu0 0.0
    %253 = vmatpush.msra.mxu0 0.0
    %254 = vmatpush.msra.mxu0 %v76
    %255 = vmatpush.msra.mxu0 %v75
    %256 = vmatpush.msra.mxu0 %v74
    %257 = vmatpush.msra.mxu0 %v73
    %258 = vmatmul.f32.gmra.mxu0 %v240
    %v259 = vpop.f32.mrf.mxu0
    %v260 = vadd.f32 %v235, %v259
    %261 = vdwg.mxu0
    %v262 = vadd.f32 %v260, %v88
    %v263 = vmul.f32 %v262, %v70
    %v264 = vtanh.pop %v263
    %v265 = vmul.f32 %v70, %v264
    %v266 = vadd.f32 %v265, %v71
    %v267 = vmul.f32 %v266, 0.0
    %269 = vrot.lane.b32.xlu0 %v266, 64
    %v270 = vpop.permute.xlu0 %269
    %v272 = vmul.f32 %v266, %v270
    %274 = vrot.lane.b32.xlu0 %v272, 32
    %v275 = vpop.permute.xlu0 %274
    %v277 = vadd.f32 %v267, %v275
    %v278 = vtanh.pop %v277
    %280 = vrot.lane.b32.xlu0 %v278, 64
    %v281 = vpop.permute.xlu0 %280
    %v283 = vmul.f32 %v266, %v281
    %284 = vmatpush.msra.mxu0 0.0
    %285 = vmatpush.msra.mxu0 0.0
    %286 = vmatpush.msra.mxu0 0.0
    %287 = vmatpush.msra.mxu0 0.0
    %288 = vmatpush.msra.mxu0 0.0
    %289 = vmatpush.msra.mxu0 0.0
    %290 = vmatpush.msra.mxu0 0.0
    %291 = vmatpush.msra.mxu0 0.0
    %292 = vmatpush.msra.mxu0 0.0
    %293 = vmatpush.msra.mxu0 0.0
    %294 = vmatpush.msra.mxu0 0.0
    %295 = vmatpush.msra.mxu0 0.0
    %296 = vmatpush.msra.mxu0 %v80
    %297 = vmatpush.msra.mxu0 %v79
    %298 = vmatpush.msra.mxu0 %v78
    %299 = vmatpush.msra.mxu0 %v77
    %300 = vmatmul.f32.gmra.mxu0 %v240
    %v301 = vpop.f32.mrf.mxu0
    %v302 = vadd.f32 0.0, %v301
    %303 = vdwg.mxu0
    %v304 = vadd.f32 %v151, %v302
    %v305 = vmul.f32 %v304, %v70
    %v306 = vtanh.pop %v305
    %v307 = vmul.f32 %v70, %v306
    %v308 = vadd.f32 %v307, %v71
    %v309 = vmul.f32 %v308, %v210
    %311 = vrot.lane.b32.xlu0 %v308, 64
    %v312 = vpop.permute.xlu0 %311
    %v314 = vmul.f32 %v308, %v312
    %316 = vrot.lane.b32.xlu0 %v314, 32
    %v317 = vpop.permute.xlu0 %316
    %v319 = vadd.f32 %v309, %v317
    %v320 = vtanh.pop %v319
    %322 = vrot.lane.b32.xlu0 %v320, 64
    %v323 = vpop.permute.xlu0 %322
    %v325 = vmul.f32 %v308, %v323
    %327 = vrot.lane.b32.xlu0 %v283, 32
    %v328 = vpop.permute.xlu0 %327
    %v329 = vsel %vm171, %v328, 0
    %331 = vmatpush.msra.mxu0 0.0
    %332 = vmatpush.msra.mxu0 0.0
    %333 = vmatpush.msra.mxu0 0.0
    %334 = vmatpush.msra.mxu0 0.0
    %335 = vmatpush.msra.mxu0 0.0
    %336 = vmatpush.msra.mxu0 0.0
    %337 = vmatpush.msra.mxu0 0.0
    %338 = vmatpush.msra.mxu0 0.0
    %339 = vmatpush.msra.mxu0 0.0
    %340 = vmatpush.msra.mxu0 0.0
    %341 = vmatpush.msra.mxu0 0.0
    %342 = vmatpush.msra.mxu0 0.0
    %343 = vmatpush.msra.mxu0 %v84
    %344 = vmatpush.msra.mxu0 %v83
    %345 = vmatpush.msra.mxu0 %v82
    %346 = vmatpush.msra.mxu0 %v81
    %347 = vmatmul.f32.gmra.mxu0 %v329
    %v348 = vpop.f32.mrf.mxu0
    %v349 = vadd.f32 0.0, %v348
    %350 = vdwg.mxu0
    %352 = vrot.lane.b32.xlu0 %v325, 32
    %v353 = vpop.permute.xlu0 %352
    %v354 = vsel %vm171, %v353, 0
    %356 = vmatpush.msra.mxu0 0.0
    %357 = vmatpush.msra.mxu0 0.0
    %358 = vmatpush.msra.mxu0 0.0
    %359 = vmatpush.msra.mxu0 0.0
    %360 = vmatpush.msra.mxu0 0.0
    %361 = vmatpush.msra.mxu0 0.0
    %362 = vmatpush.msra.mxu0 0.0
    %363 = vmatpush.msra.mxu0 0.0
    %364 = vmatpush.msra.mxu0 0.0
    %365 = vmatpush.msra.mxu0 0.0
    %366 = vmatpush.msra.mxu0 0.0
    %367 = vmatpush.msra.mxu0 0.0
    %368 = vmatpush.msra.mxu0 %v76
    %369 = vmatpush.msra.mxu0 %v75
    %370 = vmatpush.msra.mxu0 %v74
    %371 = vmatpush.msra.mxu0 %v73
    %372 = vmatmul.f32.gmra.mxu0 %v354
    %v373 = vpop.f32.mrf.mxu0
    %v374 = vadd.f32 %v349, %v373
    %375 = vdwg.mxu0
    %v376 = vadd.f32 %v374, %v88
    %v377 = vmul.f32 %v376, %v70
    %v378 = vtanh.pop %v377
    %v379 = vmul.f32 %v70, %v378
    %v380 = vadd.f32 %v379, %v71
    %v381 = vmul.f32 %v380, %v277
    %383 = vrot.lane.b32.xlu0 %v380, 64
    %v384 = vpop.permute.xlu0 %383
    %v386 = vmul.f32 %v380, %v384
    %388 = vrot.lane.b32.xlu0 %v386, 32
    %v389 = vpop.permute.xlu0 %388
    %v391 = vadd.f32 %v381, %v389
    %v392 = vtanh.pop %v391
    %394 = vrot.lane.b32.xlu0 %v392, 64
    %v395 = vpop.permute.xlu0 %394
    %v397 = vmul.f32 %v380, %v395
    %398 = vmatpush.msra.mxu0 0.0
    %399 = vmatpush.msra.mxu0 0.0
    %400 = vmatpush.msra.mxu0 0.0
    %401 = vmatpush.msra.mxu0 0.0
    %402 = vmatpush.msra.mxu0 0.0
    %403 = vmatpush.msra.mxu0 0.0
    %404 = vmatpush.msra.mxu0 0.0
    %405 = vmatpush.msra.mxu0 0.0
    %406 = vmatpush.msra.mxu0 0.0
    %407 = vmatpush.msra.mxu0 0.0
    %408 = vmatpush.msra.mxu0 0.0
    %409 = vmatpush.msra.mxu0 0.0
    %410 = vmatpush.msra.mxu0 %v80
    %411 = vmatpush.msra.mxu0 %v79
    %412 = vmatpush.msra.mxu0 %v78
    %413 = vmatpush.msra.mxu0 %v77
    %414 = vmatmul.f32.gmra.mxu0 %v354
    %v415 = vpop.f32.mrf.mxu0
    %v416 = vadd.f32 0.0, %v415
    %417 = vdwg.mxu0
    %v418 = vadd.f32 %v154, %v416
    %v419 = vmul.f32 %v418, %v70
    %v420 = vtanh.pop %v419
    %v421 = vmul.f32 %v70, %v420
    %v422 = vadd.f32 %v421, %v71
    %v423 = vmul.f32 %v422, %v319
    %425 = vrot.lane.b32.xlu0 %v422, 64
    %v426 = vpop.permute.xlu0 %425
    %v428 = vmul.f32 %v422, %v426
    %430 = vrot.lane.b32.xlu0 %v428, 32
    %v431 = vpop.permute.xlu0 %430
    %v433 = vadd.f32 %v423, %v431
    %v434 = vtanh.pop %v433
    %436 = vrot.lane.b32.xlu0 %v434, 64
    %v437 = vpop.permute.xlu0 %436
    %v439 = vmul.f32 %v422, %v437
    %441 = vrot.lane.b32.xlu0 %v397, 32
    %v442 = vpop.permute.xlu0 %441
    %v443 = vsel %vm171, %v442, 0
    %445 = vmatpush.msra.mxu0 0.0
    %446 = vmatpush.msra.mxu0 0.0
    %447 = vmatpush.msra.mxu0 0.0
    %448 = vmatpush.msra.mxu0 0.0
    %449 = vmatpush.msra.mxu0 0.0
    %450 = vmatpush.msra.mxu0 0.0
    %451 = vmatpush.msra.mxu0 0.0
    %452 = vmatpush.msra.mxu0 0.0
    %453 = vmatpush.msra.mxu0 0.0
    %454 = vmatpush.msra.mxu0 0.0
    %455 = vmatpush.msra.mxu0 0.0
    %456 = vmatpush.msra.mxu0 0.0
    %457 = vmatpush.msra.mxu0 %v84
    %458 = vmatpush.msra.mxu0 %v83
    %459 = vmatpush.msra.mxu0 %v82
    %460 = vmatpush.msra.mxu0 %v81
    %461 = vmatmul.f32.gmra.mxu0 %v443
    %v462 = vpop.f32.mrf.mxu0
    %v463 = vadd.f32 0.0, %v462
    %464 = vdwg.mxu0
    %466 = vrot.lane.b32.xlu0 %v439, 32
    %v467 = vpop.permute.xlu0 %466
    %v468 = vsel %vm171, %v467, 0
    %470 = vmatpush.msra.mxu0 0.0
    %471 = vmatpush.msra.mxu0 0.0
    %472 = vmatpush.msra.mxu0 0.0
    %473 = vmatpush.msra.mxu0 0.0
    %474 = vmatpush.msra.mxu0 0.0
    %475 = vmatpush.msra.mxu0 0.0
    %476 = vmatpush.msra.mxu0 0.0
    %477 = vmatpush.msra.mxu0 0.0
    %478 = vmatpush.msra.mxu0 0.0
    %479 = vmatpush.msra.mxu0 0.0
    %480 = vmatpush.msra.mxu0 0.0
    %481 = vmatpush.msra.mxu0 0.0
    %482 = vmatpush.msra.mxu0 %v76
    %483 = vmatpush.msra.mxu0 %v75
    %484 = vmatpush.msra.mxu0 %v74
    %485 = vmatpush.msra.mxu0 %v73
    %486 = vmatmul.f32.gmra.mxu0 %v468
    %v487 = vpop.f32.mrf.mxu0
    %v488 = vadd.f32 %v463, %v487
    %489 = vdwg.mxu0
    %v490 = vadd.f32 %v488, %v88
    %v491 = vmul.f32 %v490, %v70
    %v492 = vtanh.pop %v491
    %v493 = vmul.f32 %v70, %v492
    %v494 = vadd.f32 %v493, %v71
    %v495 = vmul.f32 %v494, %v391
    %497 = vrot.lane.b32.xlu0 %v494, 64
    %v498 = vpop.permute.xlu0 %497
    %v500 = vmul.f32 %v494, %v498
    %502 = vrot.lane.b32.xlu0 %v500, 32
    %v503 = vpop.permute.xlu0 %502
    %v505 = vadd.f32 %v495, %v503
    %v506 = vtanh.pop %v505
    %508 = vrot.lane.b32.xlu0 %v506, 64
    %v509 = vpop.permute.xlu0 %508
    %v511 = vmul.f32 %v494, %v509
    %512 = vmatpush.msra.mxu0 0.0
    %513 = vmatpush.msra.mxu0 0.0
    %514 = vmatpush.msra.mxu0 0.0
    %515 = vmatpush.msra.mxu0 0.0
    %516 = vmatpush.msra.mxu0 0.0
    %517 = vmatpush.msra.mxu0 0.0
    %518 = vmatpush.msra.mxu0 0.0
    %519 = vmatpush.msra.mxu0 0.0
    %520 = vmatpush.msra.mxu0 0.0
    %521 = vmatpush.msra.mxu0 0.0
    %522 = vmatpush.msra.mxu0 0.0
    %523 = vmatpush.msra.mxu0 0.0
    %524 = vmatpush.msra.mxu0 %v80
    %525 = vmatpush.msra.mxu0 %v79
    %526 = vmatpush.msra.mxu0 %v78
    %527 = vmatpush.msra.mxu0 %v77
    %528 = vmatmul.f32.gmra.mxu0 %v468
    %v529 = vpop.f32.mrf.mxu0
    %v530 = vadd.f32 0.0, %v529
    %531 = vdwg.mxu0
    %v532 = vadd.f32 %v157, %v530
    %v533 = vmul.f32 %v532, %v70
    %v534 = vtanh.pop %v533
    %v535 = vmul.f32 %v70, %v534
    %v536 = vadd.f32 %v535, %v71
    %v537 = vmul.f32 %v536, %v433
    %539 = vrot.lane.b32.xlu0 %v536, 64
    %v540 = vpop.permute.xlu0 %539
    %v542 = vmul.f32 %v536, %v540
    %544 = vrot.lane.b32.xlu0 %v542, 32
    %v545 = vpop.permute.xlu0 %544
    %v547 = vadd.f32 %v537, %v545
    %v548 = vtanh.pop %v547
    %550 = vrot.lane.b32.xlu0 %v548, 64
    %v551 = vpop.permute.xlu0 %550
    %v553 = vmul.f32 %v536, %v551
    %555 = vrot.lane.b32.xlu0 %v511, 32
    %v556 = vpop.permute.xlu0 %555
    %v557 = vsel %vm171, %v556, 0
    %559 = vmatpush.msra.mxu0 0.0
    %560 = vmatpush.msra.mxu0 0.0
    %561 = vmatpush.msra.mxu0 0.0
    %562 = vmatpush.msra.mxu0 0.0
    %563 = vmatpush.msra.mxu0 0.0
    %564 = vmatpush.msra.mxu0 0.0
    %565 = vmatpush.msra.mxu0 0.0
    %566 = vmatpush.msra.mxu0 0.0
    %567 = vmatpush.msra.mxu0 0.0
    %568 = vmatpush.msra.mxu0 0.0
    %569 = vmatpush.msra.mxu0 0.0
    %570 = vmatpush.msra.mxu0 0.0
    %571 = vmatpush.msra.mxu0 %v84
    %572 = vmatpush.msra.mxu0 %v83
    %573 = vmatpush.msra.mxu0 %v82
    %574 = vmatpush.msra.mxu0 %v81
    %575 = vmatmul.f32.gmra.mxu0 %v557
    %v576 = vpop.f32.mrf.mxu0
    %v577 = vadd.f32 0.0, %v576
    %578 = vdwg.mxu0
    %580 = vrot.lane.b32.xlu0 %v553, 32
    %v581 = vpop.permute.xlu0 %580
    %v582 = vsel %vm171, %v581, 0
    %584 = vmatpush.msra.mxu0 0.0
    %585 = vmatpush.msra.mxu0 0.0
    %586 = vmatpush.msra.mxu0 0.0
    %587 = vmatpush.msra.mxu0 0.0
    %588 = vmatpush.msra.mxu0 0.0
    %589 = vmatpush.msra.mxu0 0.0
    %590 = vmatpush.msra.mxu0 0.0
    %591 = vmatpush.msra.mxu0 0.0
    %592 = vmatpush.msra.mxu0 0.0
    %593 = vmatpush.msra.mxu0 0.0
    %594 = vmatpush.msra.mxu0 0.0
    %595 = vmatpush.msra.mxu0 0.0
    %596 = vmatpush.msra.mxu0 %v76
    %597 = vmatpush.msra.mxu0 %v75
    %598 = vmatpush.msra.mxu0 %v74
    %599 = vmatpush.msra.mxu0 %v73
    %600 = vmatmul.f32.gmra.mxu0 %v582
    %v601 = vpop.f32.mrf.mxu0
    %v602 = vadd.f32 %v577, %v601
    %603 = vdwg.mxu0
    %v604 = vadd.f32 %v602, %v88
    %v605 = vmul.f32 %v604, %v70
    %v606 = vtanh.pop %v605
    %v607 = vmul.f32 %v70, %v606
    %v608 = vadd.f32 %v607, %v71
    %v609 = vmul.f32 %v608, %v505
    %611 = vrot.lane.b32.xlu0 %v608, 64
    %v612 = vpop.permute.xlu0 %611
    %v614 = vmul.f32 %v608, %v612
    %616 = vrot.lane.b32.xlu0 %v614, 32
    %v617 = vpop.permute.xlu0 %616
    %v619 = vadd.f32 %v609, %v617
    %v620 = vtanh.pop %v619
    %622 = vrot.lane.b32.xlu0 %v620, 64
    %v623 = vpop.permute.xlu0 %622
    %v625 = vmul.f32 %v608, %v623
    %626 = vmatpush.msra.mxu0 0.0
    %627 = vmatpush.msra.mxu0 0.0
    %628 = vmatpush.msra.mxu0 0.0
    %629 = vmatpush.msra.mxu0 0.0
    %630 = vmatpush.msra.mxu0 0.0
    %631 = vmatpush.msra.mxu0 0.0
    %632 = vmatpush.msra.mxu0 0.0
    %633 = vmatpush.msra.mxu0 0.0
    %634 = vmatpush.msra.mxu0 0.0
    %635 = vmatpush.msra.mxu0 0.0
    %636 = vmatpush.msra.mxu0 0.0
    %637 = vmatpush.msra.mxu0 0.0
    %638 = vmatpush.msra.mxu0 %v80
    %639 = vmatpush.msra.mxu0 %v79
    %640 = vmatpush.msra.mxu0 %v78
    %641 = vmatpush.msra.mxu0 %v77
    %642 = vmatmul.f32.gmra.mxu0 %v582
    %v643 = vpop.f32.mrf.mxu0
    %v644 = vadd.f32 0.0, %v643
    %645 = vdwg.mxu0
    %v646 = vadd.f32 %v160, %v644
    %v647 = vmul.f32 %v646, %v70
    %v648 = vtanh.pop %v647
    %v649 = vmul.f32 %v70, %v648
    %v650 = vadd.f32 %v649, %v71
    %v651 = vmul.f32 %v650, %v547
    %653 = vrot.lane.b32.xlu0 %v650, 64
    %v654 = vpop.permute.xlu0 %653
    %v656 = vmul.f32 %v650, %v654
    %658 = vrot.lane.b32.xlu0 %v656, 32
    %v659 = vpop.permute.xlu0 %658
    %v661 = vadd.f32 %v651, %v659
    %v662 = vtanh.pop %v661
    %664 = vrot.lane.b32.xlu0 %v662, 64
    %v665 = vpop.permute.xlu0 %664
    %v667 = vmul.f32 %v650, %v665
    %669 = vrot.lane.b32.xlu0 %v625, 32
    %v670 = vpop.permute.xlu0 %669
    %v671 = vsel %vm171, %v670, 0
    %673 = vmatpush.msra.mxu0 0.0
    %674 = vmatpush.msra.mxu0 0.0
    %675 = vmatpush.msra.mxu0 0.0
    %676 = vmatpush.msra.mxu0 0.0
    %677 = vmatpush.msra.mxu0 0.0
    %678 = vmatpush.msra.mxu0 0.0
    %679 = vmatpush.msra.mxu0 0.0
    %680 = vmatpush.msra.mxu0 0.0
    %681 = vmatpush.msra.mxu0 0.0
    %682 = vmatpush.msra.mxu0 0.0
    %683 = vmatpush.msra.mxu0 0.0
    %684 = vmatpush.msra.mxu0 0.0
    %685 = vmatpush.msra.mxu0 %v84
    %686 = vmatpush.msra.mxu0 %v83
    %687 = vmatpush.msra.mxu0 %v82
    %688 = vmatpush.msra.mxu0 %v81
    %689 = vmatmul.f32.gmra.mxu0 %v671
    %v690 = vpop.f32.mrf.mxu0
    %v691 = vadd.f32 0.0, %v690
    %692 = vdwg.mxu0
    %694 = vrot.lane.b32.xlu0 %v667, 32
    %v695 = vpop.permute.xlu0 %694
    %v696 = vsel %vm171, %v695, 0
    %698 = vmatpush.msra.mxu0 0.0
    %699 = vmatpush.msra.mxu0 0.0
    %700 = vmatpush.msra.mxu0 0.0
    %701 = vmatpush.msra.mxu0 0.0
    %702 = vmatpush.msra.mxu0 0.0
    %703 = vmatpush.msra.mxu0 0.0
    %704 = vmatpush.msra.mxu0 0.0
    %705 = vmatpush.msra.mxu0 0.0
    %706 = vmatpush.msra.mxu0 0.0
    %707 = vmatpush.msra.mxu0 0.0
    %708 = vmatpush.msra.mxu0 0.0
    %709 = vmatpush.msra.mxu0 0.0
    %710 = vmatpush.msra.mxu0 %v76
    %711 = vmatpush.msra.mxu0 %v75
    %712 = vmatpush.msra.mxu0 %v74
    %713 = vmatpush.msra.mxu0 %v73
    %714 = vmatmul.f32.gmra.mxu0 %v696
    %v715 = vpop.f32.mrf.mxu0
    %v716 = vadd.f32 %v691, %v715
    %717 = vdwg.mxu0
    %v718 = vadd.f32 %v716, %v88
    %v719 = vmul.f32 %v718, %v70
    %v720 = vtanh.pop %v719
    %v721 = vmul.f32 %v70, %v720
    %v722 = vadd.f32 %v721, %v71
    %v723 = vmul.f32 %v722, %v619
    %725 = vrot.lane.b32.xlu0 %v722, 64
    %v726 = vpop.permute.xlu0 %725
    %v728 = vmul.f32 %v722, %v726
    %730 = vrot.lane.b32.xlu0 %v728, 32
    %v731 = vpop.permute.xlu0 %730
    %v733 = vadd.f32 %v723, %v731
    %v734 = vtanh.pop %v733
    %736 = vrot.lane.b32.xlu0 %v734, 64
    %v737 = vpop.permute.xlu0 %736
    %v739 = vmul.f32 %v722, %v737
    %740 = vmatpush.msra.mxu0 0.0
    %741 = vmatpush.msra.mxu0 0.0
    %742 = vmatpush.msra.mxu0 0.0
    %743 = vmatpush.msra.mxu0 0.0
    %744 = vmatpush.msra.mxu0 0.0
    %745 = vmatpush.msra.mxu0 0.0
    %746 = vmatpush.msra.mxu0 0.0
    %747 = vmatpush.msra.mxu0 0.0
    %748 = vmatpush.msra.mxu0 0.0
    %749 = vmatpush.msra.mxu0 0.0
    %750 = vmatpush.msra.mxu0 0.0
    %751 = vmatpush.msra.mxu0 0.0
    %752 = vmatpush.msra.mxu0 %v80
    %753 = vmatpush.msra.mxu0 %v79
    %754 = vmatpush.msra.mxu0 %v78
    %755 = vmatpush.msra.mxu0 %v77
    %756 = vmatmul.f32.gmra.mxu0 %v696
    %v757 = vpop.f32.mrf.mxu0
    %v758 = vadd.f32 0.0, %v757
    %759 = vdwg.mxu0
    %v760 = vadd.f32 %v163, %v758
    %v761 = vmul.f32 %v760, %v70
    %v762 = vtanh.pop %v761
    %v763 = vmul.f32 %v70, %v762
    %v764 = vadd.f32 %v763, %v71
    %v765 = vmul.f32 %v764, %v661
    %767 = vrot.lane.b32.xlu0 %v764, 64
    %v768 = vpop.permute.xlu0 %767
    %v770 = vmul.f32 %v764, %v768
    %772 = vrot.lane.b32.xlu0 %v770, 32
    %v773 = vpop.permute.xlu0 %772
    %v775 = vadd.f32 %v765, %v773
    %v776 = vtanh.pop %v775
    %778 = vrot.lane.b32.xlu0 %v776, 64
    %v779 = vpop.permute.xlu0 %778
    %v781 = vmul.f32 %v764, %v779
    %783 = vrot.lane.b32.xlu0 %v739, 32
    %v784 = vpop.permute.xlu0 %783
    %v785 = vsel %vm171, %v784, 0
    %787 = vmatpush.msra.mxu0 0.0
    %788 = vmatpush.msra.mxu0 0.0
    %789 = vmatpush.msra.mxu0 0.0
    %790 = vmatpush.msra.mxu0 0.0
    %791 = vmatpush.msra.mxu0 0.0
    %792 = vmatpush.msra.mxu0 0.0
    %793 = vmatpush.msra.mxu0 0.0
    %794 = vmatpush.msra.mxu0 0.0
    %795 = vmatpush.msra.mxu0 0.0
    %796 = vmatpush.msra.mxu0 0.0
    %797 = vmatpush.msra.mxu0 0.0
    %798 = vmatpush.msra.mxu0 0.0
    %799 = vmatpush.msra.mxu0 %v84
    %800 = vmatpush.msra.mxu0 %v83
    %801 = vmatpush.msra.mxu0 %v82
    %802 = vmatpush.msra.mxu0 %v81
    %803 = vmatmul.f32.gmra.mxu0 %v785
    %v804 = vpop.f32.mrf.mxu0
    %v805 = vadd.f32 0.0, %v804
    %806 = vdwg.mxu0
    %808 = vrot.lane.b32.xlu0 %v781, 32
    %v809 = vpop.permute.xlu0 %808
    %v810 = vsel %vm171, %v809, 0
    %812 = vmatpush.msra.mxu0 0.0
    %813 = vmatpush.msra.mxu0 0.0
    %814 = vmatpush.msra.mxu0 0.0
    %815 = vmatpush.msra.mxu0 0.0
    %816 = vmatpush.msra.mxu0 0.0
    %817 = vmatpush.msra.mxu0 0.0
    %818 = vmatpush.msra.mxu0 0.0
    %819 = vmatpush.msra.mxu0 0.0
    %820 = vmatpush.msra.mxu0 0.0
    %821 = vmatpush.msra.mxu0 0.0
    %822 = vmatpush.msra.mxu0 0.0
    %823 = vmatpush.msra.mxu0 0.0
    %824 = vmatpush.msra.mxu0 %v76
    %825 = vmatpush.msra.mxu0 %v75
    %826 = vmatpush.msra.mxu0 %v74
    %827 = vmatpush.msra.mxu0 %v73
    %828 = vmatmul.f32.gmra.mxu0 %v810
    %v829 = vpop.f32.mrf.mxu0
    %v830 = vadd.f32 %v805, %v829
    %831 = vdwg.mxu0
    %v832 = vadd.f32 %v830, %v88
    %v833 = vmul.f32 %v832, %v70
    %v834 = vtanh.pop %v833
    %v835 = vmul.f32 %v70, %v834
    %v836 = vadd.f32 %v835, %v71
    %v837 = vmul.f32 %v836, %v733
    %839 = vrot.lane.b32.xlu0 %v836, 64
    %v840 = vpop.permute.xlu0 %839
    %v842 = vmul.f32 %v836, %v840
    %844 = vrot.lane.b32.xlu0 %v842, 32
    %v845 = vpop.permute.xlu0 %844
    %v847 = vadd.f32 %v837, %v845
    %v848 = vtanh.pop %v847
    %850 = vrot.lane.b32.xlu0 %v848, 64
    %v851 = vpop.permute.xlu0 %850
    %v853 = vmul.f32 %v836, %v851
    %854 = vmatpush.msra.mxu0 0.0
    %855 = vmatpush.msra.mxu0 0.0
    %856 = vmatpush.msra.mxu0 0.0
    %857 = vmatpush.msra.mxu0 0.0
    %858 = vmatpush.msra.mxu0 0.0
    %859 = vmatpush.msra.mxu0 0.0
    %860 = vmatpush.msra.mxu0 0.0
    %861 = vmatpush.msra.mxu0 0.0
    %862 = vmatpush.msra.mxu0 0.0
    %863 = vmatpush.msra.mxu0 0.0
    %864 = vmatpush.msra.mxu0 0.0
    %865 = vmatpush.msra.mxu0 0.0
    %866 = vmatpush.msra.mxu0 %v80
    %867 = vmatpush.msra.mxu0 %v79
    %868 = vmatpush.msra.mxu0 %v78
    %869 = vmatpush.msra.mxu0 %v77
    %870 = vmatmul.f32.gmra.mxu0 %v810
    %v871 = vpop.f32.mrf.mxu0
    %v872 = vadd.f32 0.0, %v871
    %873 = vdwg.mxu0
    %v874 = vadd.f32 %v166, %v872
    %v875 = vmul.f32 %v874, %v70
    %v876 = vtanh.pop %v875
    %v877 = vmul.f32 %v70, %v876
    %v878 = vadd.f32 %v877, %v71
    %v879 = vmul.f32 %v878, %v775
    %881 = vrot.lane.b32.xlu0 %v878, 64
    %v882 = vpop.permute.xlu0 %881
    %v884 = vmul.f32 %v878, %v882
    %886 = vrot.lane.b32.xlu0 %v884, 32
    %v887 = vpop.permute.xlu0 %886
    %v889 = vadd.f32 %v879, %v887
    %v890 = vtanh.pop %v889
    %892 = vrot.lane.b32.xlu0 %v890, 64
    %v893 = vpop.permute.xlu0 %892
    %v895 = vmul.f32 %v878, %v893
    %897 = vrot.lane.b32.xlu0 %v853, 32
    %v898 = vpop.permute.xlu0 %897
    %v899 = vsel %vm171, %v898, 0
    %901 = vmatpush.msra.mxu0 0.0
    %902 = vmatpush.msra.mxu0 0.0
    %903 = vmatpush.msra.mxu0 0.0
    %904 = vmatpush.msra.mxu0 0.0
    %905 = vmatpush.msra.mxu0 0.0
    %906 = vmatpush.msra.mxu0 0.0
    %907 = vmatpush.msra.mxu0 0.0
    %908 = vmatpush.msra.mxu0 0.0
    %909 = vmatpush.msra.mxu0 0.0
    %910 = vmatpush.msra.mxu0 0.0
    %911 = vmatpush.msra.mxu0 0.0
    %912 = vmatpush.msra.mxu0 0.0
    %913 = vmatpush.msra.mxu0 %v84
    %914 = vmatpush.msra.mxu0 %v83
    %915 = vmatpush.msra.mxu0 %v82
    %916 = vmatpush.msra.mxu0 %v81
    %917 = vmatmul.f32.gmra.mxu0 %v899
    %v918 = vpop.f32.mrf.mxu0
    %v919 = vadd.f32 0.0, %v918
    %920 = vdwg.mxu0
    %922 = vrot.lane.b32.xlu0 %v895, 32
    %v923 = vpop.permute.xlu0 %922
    %v924 = vsel %vm171, %v923, 0
    %926 = vmatpush.msra.mxu0 0.0
    %927 = vmatpush.msra.mxu0 0.0
    %928 = vmatpush.msra.mxu0 0.0
    %929 = vmatpush.msra.mxu0 0.0
    %930 = vmatpush.msra.mxu0 0.0
    %931 = vmatpush.msra.mxu0 0.0
    %932 = vmatpush.msra.mxu0 0.0
    %933 = vmatpush.msra.mxu0 0.0
    %934 = vmatpush.msra.mxu0 0.0
    %935 = vmatpush.msra.mxu0 0.0
    %936 = vmatpush.msra.mxu0 0.0
    %937 = vmatpush.msra.mxu0 0.0
    %938 = vmatpush.msra.mxu0 %v76
    %939 = vmatpush.msra.mxu0 %v75
    %940 = vmatpush.msra.mxu0 %v74
    %941 = vmatpush.msra.mxu0 %v73
    %942 = vmatmul.f32.gmra.mxu0 %v924
    %v943 = vpop.f32.mrf.mxu0
    %v944 = vadd.f32 %v919, %v943
    %945 = vdwg.mxu0
    %v946 = vadd.f32 %v944, %v88
    %v947 = vmul.f32 %v946, %v70
    %v948 = vtanh.pop %v947
    %v949 = vmul.f32 %v70, %v948
    %v950 = vadd.f32 %v949, %v71
    %v951 = vmul.f32 %v950, %v847
    %953 = vrot.lane.b32.xlu0 %v950, 64
    %v954 = vpop.permute.xlu0 %953
    %v956 = vmul.f32 %v950, %v954
    %958 = vrot.lane.b32.xlu0 %v956, 32
    %v959 = vpop.permute.xlu0 %958
    %v961 = vadd.f32 %v951, %v959
    %v962 = vtanh.pop %v961
    %964 = vrot.lane.b32.xlu0 %v962, 64
    %v965 = vpop.permute.xlu0 %964
    %v967 = vmul.f32 %v950, %v965
    %968 = vmatpush.msra.mxu0 0.0
    %969 = vmatpush.msra.mxu0 0.0
    %970 = vmatpush.msra.mxu0 0.0
    %971 = vmatpush.msra.mxu0 0.0
    %972 = vmatpush.msra.mxu0 0.0
    %973 = vmatpush.msra.mxu0 0.0
    %974 = vmatpush.msra.mxu0 0.0
    %975 = vmatpush.msra.mxu0 0.0
    %976 = vmatpush.msra.mxu0 0.0
    %977 = vmatpush.msra.mxu0 0.0
    %978 = vmatpush.msra.mxu0 0.0
    %979 = vmatpush.msra.mxu0 0.0
    %980 = vmatpush.msra.mxu0 %v80
    %981 = vmatpush.msra.mxu0 %v79
    %982 = vmatpush.msra.mxu0 %v78
    %983 = vmatpush.msra.mxu0 %v77
    %984 = vmatmul.f32.gmra.mxu0 %v924
    %v985 = vpop.f32.mrf.mxu0
    %v986 = vadd.f32 0.0, %v985
    %987 = vdwg.mxu0
    %v988 = vadd.f32 %v169, %v986
    %v989 = vmul.f32 %v988, %v70
    %v990 = vtanh.pop %v989
    %v991 = vmul.f32 %v70, %v990
    %v992 = vadd.f32 %v991, %v71
    %v993 = vmul.f32 %v992, %v889
    %995 = vrot.lane.b32.xlu0 %v992, 64
    %v996 = vpop.permute.xlu0 %995
    %v998 = vmul.f32 %v992, %v996
    %1000 = vrot.lane.b32.xlu0 %v998, 32
    %v1001 = vpop.permute.xlu0 %1000
    %v1003 = vadd.f32 %v993, %v1001
    %v1004 = vtanh.pop %v1003
    %1006 = vrot.lane.b32.xlu0 %v1004, 64
    %v1007 = vpop.permute.xlu0 %1006
    %v1009 = vmul.f32 %v992, %v1007
    %1011 = vrot.lane.b32.xlu0 %v967, 32
    %v1012 = vpop.permute.xlu0 %1011
    %v1013 = vsel %vm171, %v1012, 0
    %1015 = vmatpush.msra.mxu0 0.0
    %1016 = vmatpush.msra.mxu0 0.0
    %1017 = vmatpush.msra.mxu0 0.0
    %1018 = vmatpush.msra.mxu0 0.0
    %1019 = vmatpush.msra.mxu0 0.0
    %1020 = vmatpush.msra.mxu0 0.0
    %1021 = vmatpush.msra.mxu0 0.0
    %1022 = vmatpush.msra.mxu0 0.0
    %1023 = vmatpush.msra.mxu0 0.0
    %1024 = vmatpush.msra.mxu0 0.0
    %1025 = vmatpush.msra.mxu0 0.0
    %1026 = vmatpush.msra.mxu0 0.0
    %1027 = vmatpush.msra.mxu0 %v84
    %1028 = vmatpush.msra.mxu0 %v83
    %1029 = vmatpush.msra.mxu0 %v82
    %1030 = vmatpush.msra.mxu0 %v81
    %1031 = vmatmul.f32.gmra.mxu0 %v1013
    %v1032 = vpop.f32.mrf.mxu0
    %v1033 = vadd.f32 0.0, %v1032
    %1034 = vdwg.mxu0
    %1036 = vrot.lane.b32.xlu0 %v1009, 32
    %v1037 = vpop.permute.xlu0 %1036
    %v1038 = vsel %vm171, %v1037, 0
    %1040 = vmatpush.msra.mxu0 0.0
    %1041 = vmatpush.msra.mxu0 0.0
    %1042 = vmatpush.msra.mxu0 0.0
    %1043 = vmatpush.msra.mxu0 0.0
    %1044 = vmatpush.msra.mxu0 0.0
    %1045 = vmatpush.msra.mxu0 0.0
    %1046 = vmatpush.msra.mxu0 0.0
    %1047 = vmatpush.msra.mxu0 0.0
    %1048 = vmatpush.msra.mxu0 0.0
    %1049 = vmatpush.msra.mxu0 0.0
    %1050 = vmatpush.msra.mxu0 0.0
    %1051 = vmatpush.msra.mxu0 0.0
    %1052 = vmatpush.msra.mxu0 %v76
    %1053 = vmatpush.msra.mxu0 %v75
    %1054 = vmatpush.msra.mxu0 %v74
    %1055 = vmatpush.msra.mxu0 %v73
    %1056 = vmatmul.f32.gmra.mxu0 %v1038
    %v1057 = vpop.f32.mrf.mxu0
    %v1058 = vadd.f32 %v1033, %v1057
    %1059 = vdwg.mxu0
    %v1060 = vadd.f32 %v1058, %v88
    %v1061 = vmul.f32 %v1060, %v70
    %v1062 = vtanh.pop %v1061
    %v1063 = vmul.f32 %v70, %v1062
    %v1064 = vadd.f32 %v1063, %v71
    %v1065 = vmul.f32 %v1064, %v961
    %1067 = vrot.lane.b32.xlu0 %v1064, 64
    %v1068 = vpop.permute.xlu0 %1067
    %v1070 = vmul.f32 %v1064, %v1068
    %1072 = vrot.lane.b32.xlu0 %v1070, 32
    %v1073 = vpop.permute.xlu0 %1072
    %v1075 = vadd.f32 %v1065, %v1073
    %v1076 = vtanh.pop %v1075
    %1078 = vrot.lane.b32.xlu0 %v1076, 64
    %v1079 = vpop.permute.xlu0 %1078
    %v1081 = vmul.f32 %v1064, %v1079
    %v1082 = vld [vmem:[#allocation5] sm:$0xff]
    %v1083 = vld [vmem:[#allocation5 + $0x8] sm:$0xff]
    %v1084 = vld [vmem:[#allocation5 + $0x10] sm:$0xff]
    %v1085 = vld [vmem:[#allocation5 + $0x18] sm:$0xff]
    %v1086 = vld [vmem:[%s8] sm:$0x1]
    %v1088 = vperm.slane %v1086, 0
    %1091 = vrot.lane.b32.xlu0 %v1081, 32
    %v1092 = vpop.permute.xlu0 %1091
    %v1093 = vsel %vm171, %v1092, 0
    %1095 = vmatpush.msra.mxu0 0.0
    %1096 = vmatpush.msra.mxu0 0.0
    %1097 = vmatpush.msra.mxu0 0.0
    %1098 = vmatpush.msra.mxu0 0.0
    %1099 = vmatpush.msra.mxu0 0.0
    %1100 = vmatpush.msra.mxu0 0.0
    %1101 = vmatpush.msra.mxu0 0.0
    %1102 = vmatpush.msra.mxu0 0.0
    %1103 = vmatpush.msra.mxu0 0.0
    %1104 = vmatpush.msra.mxu0 0.0
    %1105 = vmatpush.msra.mxu0 0.0
    %1106 = vmatpush.msra.mxu0 0.0
    %1107 = vmatpush.msra.mxu0 %v1085
    %1108 = vmatpush.msra.mxu0 %v1084
    %1109 = vmatpush.msra.mxu0 %v1083
    %1110 = vmatpush.msra.mxu0 %v1082
    %1111 = vmatmul.f32.gmra.mxu0 %v1093
    %v1112 = vpop.f32.mrf.mxu0
    %v1113 = vadd.f32 %v1088, %v1112
    %1114 = vdwg.mxu0
    %1116 = vrot.lane.b32.xlu0 %v1081, 64
    %v1117 = vpop.permute.xlu0 %1116
    %1120 = vrot.lane.b32.xlu0 %v1003, 32
    %v1121 = vpop.permute.xlu0 %1120
    %1124 = vrot.lane.b32.xlu0 %v1075, 64
    %v1125 = vpop.permute.xlu0 %1124
    %v1127 = vsel %vm171, %v1037, %v1117
    %vm1128 = vcmask 523264
    %v1129 = vsel %vm1128, %v1127, %v1121
    %vm1130 = vcmask 785408
    %v1131 = vsel %vm1130, %v1129, %v1125
    %1132 = vst [vmem:[#allocation7] sm:$0xff] %v1131
    %1133 = vst [vmem:[#allocation7 + $0x8] sm:$0xff] %v1113
    // Predicated region
    $region46: #{tpu_custom_call.1} parent=1 // pred_check
      _
    $region47: #{tpu_custom_call.1} parent=1 // pred_check_branch
      %1135 = sbr.rel (0) target = $region49
    $region48: #{tpu_custom_call.1} parent=1 // pred_region
      %1137 = vsyncadd [#allocation4], 0
      %s1139 = sshll.u32 [#allocation7], 4
      %s1140 = int_to_ptr.vmem [resolvable:$true] %s1139
      %s1141 = sshll.u32 %s9, 4
      %s1142 = int_to_ptr.hbm [resolvable:$true] %s1141
      %1144 = dma.vmem_to_hbm [thread:$0]  %s1140, 256, %s1142, [#allocation4]
    $region49: #{tpu_custom_call.1} parent=1 // pred_fallthru
      _
    // Predicated region
    $region50: #{tpu_custom_call.1} parent=1 // pred_check
      _
    $region51: #{tpu_custom_call.1} parent=1 // pred_check_branch
      %1146 = sbr.rel (0) target = $region53
    $region52: #{tpu_custom_call.1} parent=1 // pred_region
      %1148 = dma.done [#allocation4], 256
    $region53: #{tpu_custom_call.1} parent=1 // pred_fallthru
      _
    %1149 = vsyncpa [#allocation3], 1
    %1150 = vsyncpa [#allocation6], 1
    %1151 = vsyncpa [#allocation4], 1

</llo_original>
